<compile_context>
chip_gen: v6e
topology: v6e:2x2x1
jax: 0.10.0
libtpu: 0.0.40
codegen_flags: <defaults>
</compile_context>

<pallas_src>
import functools
import math

import jax
import jax.numpy as jnp
from jax.experimental import pallas as pl
from jax.experimental.pallas import tpu as pltpu

# Row (sublane) alignment for batch tiles: 16 also satisfies bf16 (16,128)
# packing for the bf16 h stream; harmless for f32.
_ALIGN_ROWS = 16


def _round_up(x: int, m: int) -> int:
    return (x + m - 1) // m * m


def _cdiv(a: int, b: int) -> int:
    return -(-a // b)


def _pad2d(x, rows, cols):
    r, c = x.shape
    if r == rows and c == cols:
        return x
    return jnp.pad(x, ((0, rows - r), (0, cols - c)))


def _gate_math(all_sum, c1, c2, D):
    """all_sum: (B, 5*D) f32; gate order [i, f1, f2, o, g] (PyTorch split order)."""
    i_g = all_sum[:, 0 * D:1 * D]
    f1g = all_sum[:, 1 * D:2 * D]
    f2g = all_sum[:, 2 * D:3 * D]
    o_g = all_sum[:, 3 * D:4 * D]
    g_g = all_sum[:, 4 * D:5 * D]
    c = jax.nn.sigmoid(i_g) * jnp.tanh(g_g)
    if c1 is not None:
        c = c + jax.nn.sigmoid(f1g) * c1
    if c2 is not None:
        c = c + jax.nn.sigmoid(f2g) * c2
    h = jax.nn.sigmoid(o_g) * jnp.tanh(c)
    return h, c


def _branch_kernel(h1_ref, c1_ref, h2_ref, c2_ref, w1_ref, w2_ref, b_ref,
                   h_out_ref, c_out_ref, *, dim):
    wdt = w1_ref.dtype
    # K-split instead of lane-axis concat: two MXU pushes that pipeline.
    all_sum = (jnp.dot(h1_ref[...].astype(wdt), w1_ref[...],
                       preferred_element_type=jnp.float32)
               + jnp.dot(h2_ref[...].astype(wdt), w2_ref[...],
                         preferred_element_type=jnp.float32)
               + b_ref[...].astype(jnp.float32))
    h, c = _gate_math(all_sum,
                      c1_ref[...].astype(jnp.float32),
                      c2_ref[...].astype(jnp.float32), dim)
    h_out_ref[...] = h.astype(h_out_ref.dtype)
    c_out_ref[...] = c.astype(c_out_ref.dtype)


def _leaf_kernel(h1_ref, c1_ref, w1_ref, b_ref, h_out_ref, c_out_ref, *, dim):
    # x2 is None: h2 = c2 = 0 -> drop the second matmul and the f2 gate.
    wdt = w1_ref.dtype
    all_sum = (jnp.dot(h1_ref[...].astype(wdt), w1_ref[...],
                       preferred_element_type=jnp.float32)
               + b_ref[...].astype(jnp.float32))
    h, c = _gate_math(all_sum, c1_ref[...].astype(jnp.float32), None, dim)
    h_out_ref[...] = h.astype(h_out_ref.dtype)
    c_out_ref[...] = c.astype(c_out_ref.dtype)


def _leaf_noc_kernel(h1_ref, w1_ref, b_ref, h_out_ref, c_out_ref, *, dim):
    # x2 is None and c1 is None: also drop the c1 DMA and the f1 gate.
    wdt = w1_ref.dtype
    all_sum = (jnp.dot(h1_ref[...].astype(wdt), w1_ref[...],
                       preferred_element_type=jnp.float32)
               + b_ref[...].astype(jnp.float32))
    h, c = _gate_math(all_sum, None, None, dim)
    h_out_ref[...] = h.astype(h_out_ref.dtype)
    c_out_ref[...] = c.astype(c_out_ref.dtype)


# Flipped to False at runtime if this jax build rejects pl.Buffered(1).
_WEIGHT_SINGLE_BUFFER = True


def tree_lstm_cell(h1, c1, h2, c2, w1, w2, bias, *, out_dim=None,
                   tile_b_max=512, h_dtype=jnp.bfloat16, c_dtype=jnp.float32,
                   keep_padded=False):
    """h*, c*: (B, D) or already-padded (B, D_pad); h2/c2 may be None (leaf),
    c1 may be None (no-c1 leaf). w1/w2: (D_pad, 5*D_pad); bias: (1, 5*D_pad)."""
    global _WEIGHT_SINGLE_BUFFER

    B = h1.shape[0]
    D_pad = w1.shape[0]
    five = w1.shape[1]
    leaf = h2 is None
    no_c1 = c1 is None

    # Balanced batch tiling: near-equal 16-row-aligned tiles (minimal garbage
    # rows); >= 2 tiles once B >= 256 so a dual-TC chip (v7x) can shard the
    # "parallel" batch axis.
    num_tiles = max(_cdiv(B, tile_b_max), 2 if B >= 256 else 1)
    tile_b = _round_up(_cdiv(B, num_tiles), _ALIGN_ROWS)
    B_pad = num_tiles * tile_b
    grid = (num_tiles,)

    hc_spec = pl.BlockSpec((tile_b, D_pad), lambda i: (i, 0))
    out_specs = (hc_spec, hc_spec)
    out_shape = (jax.ShapeDtypeStruct((B_pad, D_pad), h_dtype),
                 jax.ShapeDtypeStruct((B_pad, D_pad), c_dtype))

    h1p = _pad2d(h1, B_pad, D_pad)   # no-op if the caller kept padded layout
    if leaf:
        if no_c1:
            kernel = functools.partial(_leaf_noc_kernel, dim=D_pad)
            acts = (h1p,)
            transc = 4
        else:
            kernel = functools.partial(_leaf_kernel, dim=D_pad)
            acts = (h1p, _pad2d(c1, B_pad, D_pad))
            transc = 5
        weights = (w1, bias)
        n_w = 1
    else:
        if c1 is None:
            c1 = jnp.zeros_like(h1)
        if c2 is None:
            c2 = jnp.zeros_like(h2)
        kernel = functools.partial(_branch_kernel, dim=D_pad)
        acts = (h1p, _pad2d(c1, B_pad, D_pad),
                _pad2d(h2, B_pad, D_pad), _pad2d(c2, B_pad, D_pad))
        weights = (w1, w2, bias)
        n_w = 2
        transc = 6

    args = (*acts, *weights)

    w_item = w1.dtype.itemsize
    h_item = jnp.dtype(h_dtype).itemsize
    c_item = jnp.dtype(c_dtype).itemsize
    w_bytes = n_w * D_pad * five * w_item + five * bias.dtype.itemsize
    act_in_bytes = sum(int(a.size) * a.dtype.itemsize for a in acts)
    out_bytes = B_pad * D_pad * (h_item + c_item)
    cost = pl.CostEstimate(
        flops=2 * n_w * B_pad * D_pad * five,
        transcendentals=transc * B_pad * D_pad,
        bytes_accessed=int(w_bytes + act_in_bytes + out_bytes))

    tile_stream_bytes = tile_b * D_pad * (
        sum(a.dtype.itemsize for a in acts) + h_item + c_item)

    def _run(single_buffer):
        if single_buffer:
            # Constant block index -> one resident copy is enough.
            wkw = dict(pipeline_mode=pl.Buffered(1))
        else:
            wkw = {}
        w_spec = pl.BlockSpec((D_pad, five), lambda i: (0, 0), **wkw)
        b_spec = pl.BlockSpec((1, five), lambda i: (0, 0), **wkw)
        in_specs = ([hc_spec] * len(acts)
                    + [w_spec] * (len(weights) - 1) + [b_spec])
        wbuf = 1 if single_buffer else 2
        vmem_need = wbuf * w_bytes + 2 * tile_stream_bytes
        vmem_limit = int(min(max(2 * vmem_need + (2 << 20), 16 << 20), 128 << 20))
        return pl.pallas_call(
            kernel,
            out_shape=out_shape,
            grid=grid,
            in_specs=in_specs,
            out_specs=out_specs,
            compiler_params=pltpu.CompilerParams(
                dimension_semantics=("parallel",),
                vmem_limit_bytes=vmem_limit),
            cost_estimate=cost,
        )(*args)

    if _WEIGHT_SINGLE_BUFFER:
        try:
            h, c = _run(True)
        except Exception:
            _WEIGHT_SINGLE_BUFFER = False
            h, c = _run(False)
    else:
        h, c = _run(False)

    if keep_padded:
        return h, c
    cols = h1.shape[1] if out_dim is None else out_dim
    if B == B_pad and cols == D_pad:
        return h, c
    return h[:B, :cols], c[:B, :cols]


class BinaryTreeLSTMLayer:
    """JAX/Pallas port of the PyTorch BinaryTreeLSTMLayer (forward only).

    Batch many tree nodes of the same level into one call (stack on the batch
    axis) to fill the MXU and amortize weight traffic. With keep_padded=True,
    activations stay in the padded (B_pad, D_pad) layout across levels (h in
    bf16, c in f32) and should be sliced once at the very end of the tree.
    """

    def __init__(self, dim=200, key=None, param_dtype=jnp.bfloat16,
                 tile_b_max=512, h_dtype=jnp.bfloat16, keep_padded=False):
        self.dim = dim
        self.dim_pad = _round_up(dim, 128)
        self.tile_b_max = tile_b_max
        self.h_dtype = h_dtype
        self.keep_padded = keep_padded
        if key is None:
            key = jax.random.PRNGKey(0)
        kw, kb = jax.random.split(key)
        in_features = dim * 2
        out_features = dim * 5
        bound = 1.0 / math.sqrt(in_features)
        # nn.Linear stores weight as (out, in); generated here directly as
        # (in, out) = W^T so the kernel computes x @ W^T + b.
        w_t = jax.random.uniform(kw, (in_features, out_features),
                                 dtype=jnp.float32, minval=-bound, maxval=bound)
        b = jax.random.uniform(kb, (out_features,), dtype=jnp.float32,
                               minval=-bound, maxval=bound)
        # Unpadded copies (same dtype) kept for the pure-JAX reference check.
        self.weight_t = w_t.astype(param_dtype)
        self.bias_flat = b.astype(param_dtype)

        Dp = self.dim_pad
        # (child, in-feature, gate, out-feature); pad in/out features to Dp so
        # every gate starts on a 128-lane boundary. Gate order [i,f1,f2,o,g]
        # matches torch.split(self.dim, 1) on the Linear output.
        w_g = w_t.reshape(2, dim, 5, dim)
        w_pad = jnp.zeros((2, Dp, 5, Dp), jnp.float32)
        w_pad = w_pad.at[:, :dim, :, :dim].set(w_g).astype(param_dtype)
        self.w1 = w_pad[0].reshape(Dp, 5 * Dp)
        self.w2 = w_pad[1].reshape(Dp, 5 * Dp)
        b_pad = jnp.zeros((5, Dp), jnp.float32).at[:, :dim].set(
            b.reshape(5, dim)).astype(param_dtype)
        self.bias = b_pad.reshape(1, 5 * Dp)

    def __call__(self, x1, x2, e=None, keep_padded=None):
        keep_padded = self.keep_padded if keep_padded is None else keep_padded
        if not isinstance(x1, tuple):
            x1 = (x1, None)
        h1, c1 = x1
        if x2 is None:
            # Leaf fast path: no h2/c2 DMAs, half the matmul, no f2 gate;
            # c1 is None additionally drops the c1 DMA and the f1 gate.
            return tree_lstm_cell(h1, c1, None, None, self.w1, None, self.bias,
                                  out_dim=self.dim, tile_b_max=self.tile_b_max,
                                  h_dtype=self.h_dtype, keep_padded=keep_padded)
        if not isinstance(x2, tuple):
            x2 = (x2, None)
        h2, c2 = x2
        return tree_lstm_cell(h1, c1, h2, c2, self.w1, self.w2, self.bias,
                              out_dim=self.dim, tile_b_max=self.tile_b_max,
                              h_dtype=self.h_dtype, keep_padded=keep_padded)


def _reference(h1, c1, h2, c2, w_t, b):
    """Pure-JAX mirror of the PyTorch forward (same bf16 params as the kernel)."""
    D = h1.shape[1]
    wdt = w_t.dtype
    concat = jnp.concatenate([h1, h2], axis=1).astype(wdt)
    all_sum = jnp.dot(concat, w_t, preferred_element_type=jnp.float32) \
        + b.astype(jnp.float32)
    i, f1, f2, o, g = [all_sum[:, k * D:(k + 1) * D] for k in range(5)]
    c = (jax.nn.sigmoid(f1) * c1 + jax.nn.sigmoid(f2) * c2
         + jax.nn.sigmoid(i) * jnp.tanh(g))
    h = jax.nn.sigmoid(o) * jnp.tanh(c)
    return h, c


if __name__ == "__main__":
    key = jax.random.PRNGKey(0)

    def check(layer, B, D, kseed, leaf=False, atol=1e-2):
        ks = jax.random.split(kseed, 4)
        h1 = jax.random.normal(ks[0], (B, D), dtype=jnp.float32)
        c1 = jax.random.normal(ks[1], (B, D), dtype=jnp.float32)
        h2 = jax.random.normal(ks[2], (B, D), dtype=jnp.float32)
        c2 = jax.random.normal(ks[3], (B, D), dtype=jnp.float32)
        if leaf:
            h, c = layer(h1, None)             # x1 not a tuple, x2 None
            z = jnp.zeros_like(h1)
            h_ref, c_ref = _reference(h1, z, z, z, layer.weight_t,
                                      layer.bias_flat)
        else:
            h, c = layer((h1, c1), (h2, c2))
            h_ref, c_ref = _reference(h1, c1, h2, c2, layer.weight_t,
                                      layer.bias_flat)
        jax.block_until_ready((h, c))
        assert h.shape == (B, D) and c.shape == (B, D)
        err_h = float(jnp.max(jnp.abs(h.astype(jnp.float32) - h_ref)))
        err_c = float(jnp.max(jnp.abs(c.astype(jnp.float32) - c_ref)))
        assert err_h < atol, ("h mismatch", err_h)
        assert err_c < atol, ("c mismatch", err_c)

    def check_chain(layer, B, D, kseed, atol=3e-2):
        # Two leaves feeding a branch, keeping the padded layout between
        # levels (no per-level pad/slice copies); slice once at the end.
        ka, kb = jax.random.split(kseed)
        xa = jax.random.normal(ka, (B, D), dtype=jnp.float32)
        xb = jax.random.normal(kb, (B, D), dtype=jnp.float32)
        left = layer(xa, None, keep_padded=True)
        right = layer(xb, None, keep_padded=True)
        h, c = layer(left, right, keep_padded=True)
        h = h[:B, :D].astype(jnp.float32)
        c = c[:B, :D]
        jax.block_until_ready((h, c))
        z = jnp.zeros_like(xa)
        hl, cl = _reference(xa, z, z, z, layer.weight_t, layer.bias_flat)
        hr, cr = _reference(xb, z, z, z, layer.weight_t, layer.bias_flat)
        to_bf = lambda t: t.astype(jnp.bfloat16).astype(jnp.float32)
        h_ref, c_ref = _reference(to_bf(hl), cl, to_bf(hr), cr,
                                  layer.weight_t, layer.bias_flat)
        assert float(jnp.max(jnp.abs(h - h_ref))) < atol
        assert float(jnp.max(jnp.abs(c - c_ref))) < atol

    k1, k2, k3, k4, k5 = jax.random.split(key, 5)

    # 1) lane-aligned dim, single grid step (branch + no-c1 leaf fast path)
    layer128 = BinaryTreeLSTMLayer(dim=128, key=k1)
    check(layer128, B=8, D=128, kseed=k2)
    check(layer128, B=8, D=128, kseed=k2, leaf=True)

    # 2) module default dim=200 -> lanes padded to 256; odd small batch
    layer200 = BinaryTreeLSTMLayer(dim=200, key=k3)
    check(layer200, B=5, D=200, kseed=k4)

    # 3) balanced multi-tile batch grid (B=300 -> 2 tiles of 160 rows,
    #    weights stay VMEM-resident / single-buffered across grid steps)
    check(layer128, B=300, D=128, kseed=k4)

    # 4) padded-layout chaining across two tree levels (bf16 h, f32 c)
    check_chain(layer200, B=8, D=200, kseed=k5)

    print("KERNEL_OK")
</pallas_src>

<mosaic_0001>
module attributes {stable_mosaic.version = 11 : i64} {
  func.func @_branch_kernel(%arg0: i32, %arg1: memref<16x128xf32, #tpu.memory_space<vmem>>, %arg2: memref<16x128xf32, #tpu.memory_space<vmem>>, %arg3: memref<16x128xf32, #tpu.memory_space<vmem>>, %arg4: memref<16x128xf32, #tpu.memory_space<vmem>>, %arg5: memref<128x640xbf16, #tpu.memory_space<vmem>>, %arg6: memref<128x640xbf16, #tpu.memory_space<vmem>>, %arg7: memref<1x640xbf16, #tpu.memory_space<vmem>>, %arg8: memref<16x128xbf16, #tpu.memory_space<vmem>>, %arg9: memref<16x128xf32, #tpu.memory_space<vmem>>) attributes {dimension_semantics = [#tpu.dimension_semantics<parallel>], iteration_bounds = array<i64: 1>, scalar_prefetch = 0 : i64, scratch_operands = 0 : i64, tpu.core_type = #tpu.core_type<tc>, window_params = [{transform_indices = @transform_0, window_bounds = array<i64: 16, 128>}, {transform_indices = @transform_1, window_bounds = array<i64: 16, 128>}, {transform_indices = @transform_2, window_bounds = array<i64: 16, 128>}, {transform_indices = @transform_3, window_bounds = array<i64: 16, 128>}, {pipeline_mode = #tpu.pipeline_mode<synchronous>, transform_indices = @transform_4, window_bounds = array<i64: 128, 640>}, {pipeline_mode = #tpu.pipeline_mode<synchronous>, transform_indices = @transform_5, window_bounds = array<i64: 128, 640>}, {pipeline_mode = #tpu.pipeline_mode<synchronous>, transform_indices = @transform_6, window_bounds = array<i64: 1, 640>}, {transform_indices = @transform_7, window_bounds = array<i64: 16, 128>}, {transform_indices = @transform_8, window_bounds = array<i64: 16, 128>}]} {
    %c0 = arith.constant 0 : index
    %c0_0 = arith.constant 0 : index
    %0 = vector.load %arg1[%c0, %c0_0] : memref<16x128xf32, #tpu.memory_space<vmem>>, vector<16x128xf32>
    %1 = arith.truncf %0 : vector<16x128xf32> to vector<16x128xbf16>
    %c0_1 = arith.constant 0 : index
    %c0_2 = arith.constant 0 : index
    %2 = vector.load %arg5[%c0_1, %c0_2] : memref<128x640xbf16, #tpu.memory_space<vmem>>, vector<128x640xbf16>
    %cst = arith.constant dense<0.000000e+00> : vector<16x640xf32>
    %3 = tpu.matmul %1, %2, %cst {dimension_numbers = #tpu.dot_dimension_numbers<[1], [0], [0], [1], [0, 0, 1, 1], [], []>} : vector<16x128xbf16>, vector<128x640xbf16>, vector<16x640xf32> -> vector<16x640xf32>
    %c0_3 = arith.constant 0 : index
    %c0_4 = arith.constant 0 : index
    %4 = vector.load %arg3[%c0_3, %c0_4] : memref<16x128xf32, #tpu.memory_space<vmem>>, vector<16x128xf32>
    %5 = arith.truncf %4 : vector<16x128xf32> to vector<16x128xbf16>
    %c0_5 = arith.constant 0 : index
    %c0_6 = arith.constant 0 : index
    %6 = vector.load %arg6[%c0_5, %c0_6] : memref<128x640xbf16, #tpu.memory_space<vmem>>, vector<128x640xbf16>
    %cst_7 = arith.constant dense<0.000000e+00> : vector<16x640xf32>
    %7 = tpu.matmul %5, %6, %cst_7 {dimension_numbers = #tpu.dot_dimension_numbers<[1], [0], [0], [1], [0, 0, 1, 1], [], []>} : vector<16x128xbf16>, vector<128x640xbf16>, vector<16x640xf32> -> vector<16x640xf32>
    %8 = arith.addf %3, %7 : vector<16x640xf32>
    %c0_8 = arith.constant 0 : index
    %c0_9 = arith.constant 0 : index
    %9 = vector.load %arg7[%c0_8, %c0_9] : memref<1x640xbf16, #tpu.memory_space<vmem>>, vector<1x640xbf16>
    %10 = arith.extf %9 : vector<1x640xbf16> to vector<1x640xf32>
    %11 = vector.broadcast %10 : vector<1x640xf32> to vector<16x640xf32>
    %12 = arith.addf %8, %11 : vector<16x640xf32>
    %c0_10 = arith.constant 0 : index
    %c0_11 = arith.constant 0 : index
    %13 = vector.load %arg2[%c0_10, %c0_11] : memref<16x128xf32, #tpu.memory_space<vmem>>, vector<16x128xf32>
    %c0_12 = arith.constant 0 : index
    %c0_13 = arith.constant 0 : index
    %14 = vector.load %arg4[%c0_12, %c0_13] : memref<16x128xf32, #tpu.memory_space<vmem>>, vector<16x128xf32>
    %15 = vector.extract_strided_slice %12 {offsets = [0, 0], sizes = [16, 128], strides = [1, 1]} : vector<16x640xf32> to vector<16x128xf32>
    %16 = vector.extract_strided_slice %12 {offsets = [0, 128], sizes = [16, 128], strides = [1, 1]} : vector<16x640xf32> to vector<16x128xf32>
    %17 = vector.extract_strided_slice %12 {offsets = [0, 256], sizes = [16, 128], strides = [1, 1]} : vector<16x640xf32> to vector<16x128xf32>
    %18 = vector.extract_strided_slice %12 {offsets = [0, 384], sizes = [16, 128], strides = [1, 1]} : vector<16x640xf32> to vector<16x128xf32>
    %19 = vector.extract_strided_slice %12 {offsets = [0, 512], sizes = [16, 128], strides = [1, 1]} : vector<16x640xf32> to vector<16x128xf32>
    %20 = arith.negf %15 : vector<16x128xf32>
    %21 = math.exp %20 : vector<16x128xf32>
    %cst_14 = arith.constant 1.000000e+00 : f32
    %22 = vector.broadcast %cst_14 : f32 to vector<16x128xf32>
    %23 = arith.addf %22, %21 : vector<16x128xf32>
    %24 = arith.divf %22, %23 : vector<16x128xf32>
    %25 = math.tanh %19 : vector<16x128xf32>
    %26 = arith.mulf %24, %25 : vector<16x128xf32>
    %27 = arith.negf %16 : vector<16x128xf32>
    %28 = math.exp %27 : vector<16x128xf32>
    %cst_15 = arith.constant 1.000000e+00 : f32
    %29 = vector.broadcast %cst_15 : f32 to vector<16x128xf32>
    %30 = arith.addf %29, %28 : vector<16x128xf32>
    %31 = arith.divf %29, %30 : vector<16x128xf32>
    %32 = arith.mulf %31, %13 : vector<16x128xf32>
    %33 = arith.addf %26, %32 : vector<16x128xf32>
    %34 = arith.negf %17 : vector<16x128xf32>
    %35 = math.exp %34 : vector<16x128xf32>
    %cst_16 = arith.constant 1.000000e+00 : f32
    %36 = vector.broadcast %cst_16 : f32 to vector<16x128xf32>
    %37 = arith.addf %36, %35 : vector<16x128xf32>
    %38 = arith.divf %36, %37 : vector<16x128xf32>
    %39 = arith.mulf %38, %14 : vector<16x128xf32>
    %40 = arith.addf %33, %39 : vector<16x128xf32>
    %41 = arith.negf %18 : vector<16x128xf32>
    %42 = math.exp %41 : vector<16x128xf32>
    %cst_17 = arith.constant 1.000000e+00 : f32
    %43 = vector.broadcast %cst_17 : f32 to vector<16x128xf32>
    %44 = arith.addf %43, %42 : vector<16x128xf32>
    %45 = arith.divf %43, %44 : vector<16x128xf32>
    %46 = math.tanh %40 : vector<16x128xf32>
    %47 = arith.mulf %45, %46 : vector<16x128xf32>
    %48 = arith.truncf %47 : vector<16x128xf32> to vector<16x128xbf16>
    %c0_18 = arith.constant 0 : index
    %c0_19 = arith.constant 0 : index
    %49 = vector.load %arg8[%c0_18, %c0_19] : memref<16x128xbf16, #tpu.memory_space<vmem>>, vector<16x128xbf16>
    tpu.vector_store %arg8[%c0_18, %c0_19], %48 {strides = array<i32>} : memref<16x128xbf16, #tpu.memory_space<vmem>>, vector<16x128xbf16>,
    %c0_20 = arith.constant 0 : index
    %c0_21 = arith.constant 0 : index
    %50 = vector.load %arg9[%c0_20, %c0_21] : memref<16x128xf32, #tpu.memory_space<vmem>>, vector<16x128xf32>
    tpu.vector_store %arg9[%c0_20, %c0_21], %40 {strides = array<i32>} : memref<16x128xf32, #tpu.memory_space<vmem>>, vector<16x128xf32>,
    return
  }
  func.func @transform_0(%arg0: i32) -> (i32, i32) {
    %c0_i32 = arith.constant 0 : i32
    %c0_i32_0 = arith.constant 0 : i32
    return %arg0, %c0_i32 : i32, i32
  }
  func.func @transform_1(%arg0: i32) -> (i32, i32) {
    %c0_i32 = arith.constant 0 : i32
    %c0_i32_0 = arith.constant 0 : i32
    return %arg0, %c0_i32 : i32, i32
  }
  func.func @transform_2(%arg0: i32) -> (i32, i32) {
    %c0_i32 = arith.constant 0 : i32
    %c0_i32_0 = arith.constant 0 : i32
    return %arg0, %c0_i32 : i32, i32
  }
  func.func @transform_3(%arg0: i32) -> (i32, i32) {
    %c0_i32 = arith.constant 0 : i32
    %c0_i32_0 = arith.constant 0 : i32
    return %arg0, %c0_i32 : i32, i32
  }
  func.func @transform_4(%arg0: i32) -> (i32, i32) {
    %c0_i32 = arith.constant 0 : i32
    %c0_i32_0 = arith.constant 0 : i32
    %c0_i32_1 = arith.constant 0 : i32
    return %c0_i32, %c0_i32_0 : i32, i32
  }
  func.func @transform_5(%arg0: i32) -> (i32, i32) {
    %c0_i32 = arith.constant 0 : i32
    %c0_i32_0 = arith.constant 0 : i32
    %c0_i32_1 = arith.constant 0 : i32
    return %c0_i32, %c0_i32_0 : i32, i32
  }
  func.func @transform_6(%arg0: i32) -> (i32, i32) {
    %c0_i32 = arith.constant 0 : i32
    %c0_i32_0 = arith.constant 0 : i32
    %c0_i32_1 = arith.constant 0 : i32
    return %c0_i32, %c0_i32_0 : i32, i32
  }
  func.func @transform_7(%arg0: i32) -> (i32, i32) {
    %c0_i32 = arith.constant 0 : i32
    %c0_i32_0 = arith.constant 0 : i32
    return %arg0, %c0_i32 : i32, i32
  }
  func.func @transform_8(%arg0: i32) -> (i32, i32) {
    %c0_i32 = arith.constant 0 : i32
    %c0_i32_0 = arith.constant 0 : i32
    return %arg0, %c0_i32 : i32, i32
  }
}

module attributes {stable_mosaic.version = 11 : i64} {
  func.func @_branch_kernel(%arg0: i32, %arg1: memref<16x128xf32, #tpu.memory_space<vmem>>, %arg2: memref<16x128xf32, #tpu.memory_space<vmem>>, %arg3: memref<16x128xf32, #tpu.memory_space<vmem>>, %arg4: memref<16x128xf32, #tpu.memory_space<vmem>>, %arg5: memref<128x640xbf16, #tpu.memory_space<vmem>>, %arg6: memref<128x640xbf16, #tpu.memory_space<vmem>>, %arg7: memref<1x640xbf16, #tpu.memory_space<vmem>>, %arg8: memref<16x128xbf16, #tpu.memory_space<vmem>>, %arg9: memref<16x128xf32, #tpu.memory_space<vmem>>) attributes {dimension_semantics = [#tpu.dimension_semantics<parallel>], iteration_bounds = array<i64: 1>, scalar_prefetch = 0 : i64, scratch_operands = 0 : i64, tpu.core_type = #tpu.core_type<tc>, window_params = [{transform_indices = @transform_0, window_bounds = array<i64: 16, 128>}, {transform_indices = @transform_1, window_bounds = array<i64: 16, 128>}, {transform_indices = @transform_2, window_bounds = array<i64: 16, 128>}, {transform_indices = @transform_3, window_bounds = array<i64: 16, 128>}, {pipeline_mode = #tpu.pipeline_mode<synchronous>, transform_indices = @transform_4, window_bounds = array<i64: 128, 640>}, {pipeline_mode = #tpu.pipeline_mode<synchronous>, transform_indices = @transform_5, window_bounds = array<i64: 128, 640>}, {pipeline_mode = #tpu.pipeline_mode<synchronous>, transform_indices = @transform_6, window_bounds = array<i64: 1, 640>}, {transform_indices = @transform_7, window_bounds = array<i64: 16, 128>}, {transform_indices = @transform_8, window_bounds = array<i64: 16, 128>}]} {
    %c0 = arith.constant 0 : index
    %c0_0 = arith.constant 0 : index
    %0 = vector.load %arg1[%c0, %c0_0] : memref<16x128xf32, #tpu.memory_space<vmem>>, vector<16x128xf32>
    %1 = arith.truncf %0 : vector<16x128xf32> to vector<16x128xbf16>
    %c0_1 = arith.constant 0 : index
    %c0_2 = arith.constant 0 : index
    %2 = vector.load %arg5[%c0_1, %c0_2] : memref<128x640xbf16, #tpu.memory_space<vmem>>, vector<128x640xbf16>
    %cst = arith.constant dense<0.000000e+00> : vector<16x640xf32>
    %3 = tpu.matmul %1, %2, %cst {dimension_numbers = #tpu.dot_dimension_numbers<[1], [0], [0], [1], [0, 0, 1, 1], [], []>} : vector<16x128xbf16>, vector<128x640xbf16>, vector<16x640xf32> -> vector<16x640xf32>
    %c0_3 = arith.constant 0 : index
    %c0_4 = arith.constant 0 : index
    %4 = vector.load %arg3[%c0_3, %c0_4] : memref<16x128xf32, #tpu.memory_space<vmem>>, vector<16x128xf32>
    %5 = arith.truncf %4 : vector<16x128xf32> to vector<16x128xbf16>
    %c0_5 = arith.constant 0 : index
    %c0_6 = arith.constant 0 : index
    %6 = vector.load %arg6[%c0_5, %c0_6] : memref<128x640xbf16, #tpu.memory_space<vmem>>, vector<128x640xbf16>
    %cst_7 = arith.constant dense<0.000000e+00> : vector<16x640xf32>
    %7 = tpu.matmul %5, %6, %cst_7 {dimension_numbers = #tpu.dot_dimension_numbers<[1], [0], [0], [1], [0, 0, 1, 1], [], []>} : vector<16x128xbf16>, vector<128x640xbf16>, vector<16x640xf32> -> vector<16x640xf32>
    %8 = arith.addf %3, %7 : vector<16x640xf32>
    %c0_8 = arith.constant 0 : index
    %c0_9 = arith.constant 0 : index
    %9 = vector.load %arg7[%c0_8, %c0_9] : memref<1x640xbf16, #tpu.memory_space<vmem>>, vector<1x640xbf16>
    %10 = arith.extf %9 : vector<1x640xbf16> to vector<1x640xf32>
    %11 = vector.broadcast %10 : vector<1x640xf32> to vector<16x640xf32>
    %12 = arith.addf %8, %11 : vector<16x640xf32>
    %c0_10 = arith.constant 0 : index
    %c0_11 = arith.constant 0 : index
    %13 = vector.load %arg2[%c0_10, %c0_11] : memref<16x128xf32, #tpu.memory_space<vmem>>, vector<16x128xf32>
    %c0_12 = arith.constant 0 : index
    %c0_13 = arith.constant 0 : index
    %14 = vector.load %arg4[%c0_12, %c0_13] : memref<16x128xf32, #tpu.memory_space<vmem>>, vector<16x128xf32>
    %15 = vector.extract_strided_slice %12 {offsets = [0, 0], sizes = [16, 128], strides = [1, 1]} : vector<16x640xf32> to vector<16x128xf32>
    %16 = vector.extract_strided_slice %12 {offsets = [0, 128], sizes = [16, 128], strides = [1, 1]} : vector<16x640xf32> to vector<16x128xf32>
    %17 = vector.extract_strided_slice %12 {offsets = [0, 256], sizes = [16, 128], strides = [1, 1]} : vector<16x640xf32> to vector<16x128xf32>
    %18 = vector.extract_strided_slice %12 {offsets = [0, 384], sizes = [16, 128], strides = [1, 1]} : vector<16x640xf32> to vector<16x128xf32>
    %19 = vector.extract_strided_slice %12 {offsets = [0, 512], sizes = [16, 128], strides = [1, 1]} : vector<16x640xf32> to vector<16x128xf32>
    %20 = arith.negf %15 : vector<16x128xf32>
    %21 = math.exp %20 : vector<16x128xf32>
    %cst_14 = arith.constant 1.000000e+00 : f32
    %22 = vector.broadcast %cst_14 : f32 to vector<16x128xf32>
    %23 = arith.addf %22, %21 : vector<16x128xf32>
    %24 = arith.divf %22, %23 : vector<16x128xf32>
    %25 = math.tanh %19 : vector<16x128xf32>
    %26 = arith.mulf %24, %25 : vector<16x128xf32>
    %27 = arith.negf %16 : vector<16x128xf32>
    %28 = math.exp %27 : vector<16x128xf32>
    %cst_15 = arith.constant 1.000000e+00 : f32
    %29 = vector.broadcast %cst_15 : f32 to vector<16x128xf32>
    %30 = arith.addf %29, %28 : vector<16x128xf32>
    %31 = arith.divf %29, %30 : vector<16x128xf32>
    %32 = arith.mulf %31, %13 : vector<16x128xf32>
    %33 = arith.addf %26, %32 : vector<16x128xf32>
    %34 = arith.negf %17 : vector<16x128xf32>
    %35 = math.exp %34 : vector<16x128xf32>
    %cst_16 = arith.constant 1.000000e+00 : f32
    %36 = vector.broadcast %cst_16 : f32 to vector<16x128xf32>
    %37 = arith.addf %36, %35 : vector<16x128xf32>
    %38 = arith.divf %36, %37 : vector<16x128xf32>
    %39 = arith.mulf %38, %14 : vector<16x128xf32>
    %40 = arith.addf %33, %39 : vector<16x128xf32>
    %41 = arith.negf %18 : vector<16x128xf32>
    %42 = math.exp %41 : vector<16x128xf32>
    %cst_17 = arith.constant 1.000000e+00 : f32
    %43 = vector.broadcast %cst_17 : f32 to vector<16x128xf32>
    %44 = arith.addf %43, %42 : vector<16x128xf32>
    %45 = arith.divf %43, %44 : vector<16x128xf32>
    %46 = math.tanh %40 : vector<16x128xf32>
    %47 = arith.mulf %45, %46 : vector<16x128xf32>
    %48 = arith.truncf %47 : vector<16x128xf32> to vector<16x128xbf16>
    %c0_18 = arith.constant 0 : index
    %c0_19 = arith.constant 0 : index
    %49 = vector.load %arg8[%c0_18, %c0_19] : memref<16x128xbf16, #tpu.memory_space<vmem>>, vector<16x128xbf16>
    tpu.vector_store %arg8[%c0_18, %c0_19], %48 {strides = array<i32>} : memref<16x128xbf16, #tpu.memory_space<vmem>>, vector<16x128xbf16>,
    %c0_20 = arith.constant 0 : index
    %c0_21 = arith.constant 0 : index
    %50 = vector.load %arg9[%c0_20, %c0_21] : memref<16x128xf32, #tpu.memory_space<vmem>>, vector<16x128xf32>
    tpu.vector_store %arg9[%c0_20, %c0_21], %40 {strides = array<i32>} : memref<16x128xf32, #tpu.memory_space<vmem>>, vector<16x128xf32>,
    return
  }
  func.func @transform_0(%arg0: i32) -> (i32, i32) {
    %c0_i32 = arith.constant 0 : i32
    %c0_i32_0 = arith.constant 0 : i32
    return %arg0, %c0_i32 : i32, i32
  }
  func.func @transform_1(%arg0: i32) -> (i32, i32) {
    %c0_i32 = arith.constant 0 : i32
    %c0_i32_0 = arith.constant 0 : i32
    return %arg0, %c0_i32 : i32, i32
  }
  func.func @transform_2(%arg0: i32) -> (i32, i32) {
    %c0_i32 = arith.constant 0 : i32
    %c0_i32_0 = arith.constant 0 : i32
    return %arg0, %c0_i32 : i32, i32
  }
  func.func @transform_3(%arg0: i32) -> (i32, i32) {
    %c0_i32 = arith.constant 0 : i32
    %c0_i32_0 = arith.constant 0 : i32
    return %arg0, %c0_i32 : i32, i32
  }
  func.func @transform_4(%arg0: i32) -> (i32, i32) {
    %c0_i32 = arith.constant 0 : i32
    %c0_i32_0 = arith.constant 0 : i32
    %c0_i32_1 = arith.constant 0 : i32
    return %c0_i32, %c0_i32_0 : i32, i32
  }
  func.func @transform_5(%arg0: i32) -> (i32, i32) {
    %c0_i32 = arith.constant 0 : i32
    %c0_i32_0 = arith.constant 0 : i32
    %c0_i32_1 = arith.constant 0 : i32
    return %c0_i32, %c0_i32_0 : i32, i32
  }
  func.func @transform_6(%arg0: i32) -> (i32, i32) {
    %c0_i32 = arith.constant 0 : i32
    %c0_i32_0 = arith.constant 0 : i32
    %c0_i32_1 = arith.constant 0 : i32
    return %c0_i32, %c0_i32_0 : i32, i32
  }
  func.func @transform_7(%arg0: i32) -> (i32, i32) {
    %c0_i32 = arith.constant 0 : i32
    %c0_i32_0 = arith.constant 0 : i32
    return %arg0, %c0_i32 : i32, i32
  }
  func.func @transform_8(%arg0: i32) -> (i32, i32) {
    %c0_i32 = arith.constant 0 : i32
    %c0_i32_0 = arith.constant 0 : i32
    return %arg0, %c0_i32 : i32, i32
  }
}

</mosaic_0001>

<llo_original>
// kernel: tpu_custom_call.1
$region0: #{tpu_custom_call.1}
  #allocation0 [shape = 'u32[]', space=smem, size = 0x4, offset = 0x4, fixed_abs, tag = 'smem constant byte address 0x4 - core index']
  #allocation1 [shape = 'u32[144,128]{1,0:T(1,128)}', space=vmem, size = 0x12000, scoped, tag = 'internal scratch']
  %s0 = inlined_call_operand.hbm [shape: f32[16,128], index: 0, kind: input, shape index: {}]
  %s1 = inlined_call_operand.hbm [shape: f32[16,128], index: 1, kind: input, shape index: {}]
  %s2 = inlined_call_operand.hbm [shape: f32[16,128], index: 2, kind: input, shape index: {}]
  %s3 = inlined_call_operand.hbm [shape: f32[16,128], index: 3, kind: input, shape index: {}]
  %s4 = inlined_call_operand.hbm [shape: bf16[128,640], index: 4, kind: input, shape index: {}]
  %s5 = inlined_call_operand.hbm [shape: bf16[128,640], index: 5, kind: input, shape index: {}]
  %s6 = inlined_call_operand.vmem [shape: bf16[1,640], index: 6, kind: input, shape index: {}]
  %s7 = inlined_call_operand.hbm [shape: bf16[16,128], index: 7, kind: output, shape index: {0}]
  %s8 = inlined_call_operand.hbm [shape: f32[16,128], index: 8, kind: output, shape index: {1}]
  %9 = xla_tuple %s7, %s8
  %s10 = sld [smem:[#allocation0]]
  $region70: #{tpu_custom_call.1} parent=0
    _
  %s12 = ssub.s32 1, %s10
  %s13 = scalar_select 0, %s12, %s10
  $region1: #{tpu_custom_call.1} parent=0
    #allocation2 [shape = 'u8[8192]{0}', space=vmem, size = 0x2000, scoped, tag = 'input window, operand 0, single buffered']
    #allocation3 [shape = 's32[1]{0}', space=sflag, size = 0x4, scoped, tag = 'scoped memory for tpu_custom_call.1']
    #allocation4 [shape = 's32[1]{0}', space=sflag, size = 0x4, scoped, tag = 'scoped memory for tpu_custom_call.1']
    #allocation5 [shape = 'u8[8192]{0}', space=vmem, size = 0x2000, scoped, tag = 'input window, operand 1, single buffered']
    #allocation6 [shape = 's32[1]{0}', space=sflag, size = 0x4, scoped, tag = 'scoped memory for tpu_custom_call.1']
    #allocation7 [shape = 'u8[8192]{0}', space=vmem, size = 0x2000, scoped, tag = 'input window, operand 2, single buffered']
    #allocation8 [shape = 'u8[8192]{0}', space=vmem, size = 0x2000, scoped, tag = 'input window, operand 3, single buffered']
    #allocation9 [shape = 's32[1]{0}', space=sflag, size = 0x4, scoped, tag = 'scoped memory for tpu_custom_call.1']
    #allocation10 [shape = 'u8[163840]{0}', space=vmem, size = 0x28000, scoped, tag = 'input window, operand 4, single buffered']
    #allocation11 [shape = 'u8[163840]{0}', space=vmem, size = 0x28000, scoped, tag = 'input window, operand 5, single buffered']
    #allocation12 [shape = 's32[1]{0}', space=sflag, size = 0x4, scoped, tag = 'scoped memory for tpu_custom_call.1']
    #allocation13 [shape = 'u8[4096]{0}', space=vmem, size = 0x1000, scoped, tag = 'output window, operand 0, single buffered']
    #allocation14 [shape = 'u8[8192]{0}', space=vmem, size = 0x2000, scoped, tag = 'output window, operand 1, single buffered']
    #allocation15 [shape = 's32[1]{0}', space=sflag, size = 0x4, scoped, tag = 'scoped memory for tpu_custom_call.1']
    %14 = vsyncpa [#allocation3], 0
    %15 = vsyncpa [#allocation6], 0
    %16 = vsyncpa [#allocation9], 0
    %17 = vsyncpa [#allocation12], 0
    %18 = vsyncpa [#allocation4], 0
    %19 = vsyncpa [#allocation15], 0
    // Predicated region
    $region2: #{tpu_custom_call.1} parent=1 // pred_check
      _
    $region3: #{tpu_custom_call.1} parent=1 // pred_check_branch
      %21 = sbr.rel (0) target = $region5
    $region4: #{tpu_custom_call.1} parent=1 // pred_region
      %s23 = ssub.s32 256, 256
      %24 = vsyncadd [#allocation3], %s23
      %s25 = sshll.u32 [#allocation2], 4
      %s26 = int_to_ptr.vmem [resolvable:$true] %s25
      %31 = dma.hbm_to_vmem [thread:$0]  %s0, 256, %s26, [#allocation3], 128, 128, 8
    $region5: #{tpu_custom_call.1} parent=1 // pred_fallthru
      _
    // Predicated region
    $region6: #{tpu_custom_call.1} parent=1 // pred_check
      _
    $region7: #{tpu_custom_call.1} parent=1 // pred_check_branch
      %33 = sbr.rel (0) target = $region9
    $region8: #{tpu_custom_call.1} parent=1 // pred_region
      %s35 = ssub.s32 256, 256
      %36 = vsyncadd [#allocation6], %s35
      %s37 = sshll.u32 [#allocation5], 4
      %s38 = int_to_ptr.vmem [resolvable:$true] %s37
      %43 = dma.hbm_to_vmem [thread:$0]  %s1, 256, %s38, [#allocation6], 128, 128, 8
    $region9: #{tpu_custom_call.1} parent=1 // pred_fallthru
      _
    // Predicated region
    $region10: #{tpu_custom_call.1} parent=1 // pred_check
      _
    $region11: #{tpu_custom_call.1} parent=1 // pred_check_branch
      %45 = sbr.rel (0) target = $region13
    $region12: #{tpu_custom_call.1} parent=1 // pred_region
      %s47 = ssub.s32 256, 256
      %48 = vsyncadd [#allocation6], %s47
      %s49 = sshll.u32 [#allocation7], 4
      %s50 = int_to_ptr.vmem [resolvable:$true] %s49
      %55 = dma.hbm_to_vmem [thread:$0]  %s2, 256, %s50, [#allocation6], 128, 128, 8
    $region13: #{tpu_custom_call.1} parent=1 // pred_fallthru
      _
    // Predicated region
    $region14: #{tpu_custom_call.1} parent=1 // pred_check
      _
    $region15: #{tpu_custom_call.1} parent=1 // pred_check_branch
      %57 = sbr.rel (0) target = $region17
    $region16: #{tpu_custom_call.1} parent=1 // pred_region
      %s59 = ssub.s32 256, 256
      %60 = vsyncadd [#allocation9], %s59
      %s61 = sshll.u32 [#allocation8], 4
      %s62 = int_to_ptr.vmem [resolvable:$true] %s61
      %67 = dma.hbm_to_vmem [thread:$0]  %s3, 256, %s62, [#allocation9], 128, 128, 8
    $region17: #{tpu_custom_call.1} parent=1 // pred_fallthru
      _
    // Predicated region
    $region18: #{tpu_custom_call.1} parent=1 // pred_check
      _
    $region19: #{tpu_custom_call.1} parent=1 // pred_check_branch
      %69 = sbr.rel (0) target = $region21
    $region20: #{tpu_custom_call.1} parent=1 // pred_region
      %s71 = ssub.s32 5120, 5120
      %72 = vsyncadd [#allocation9], %s71
      %s73 = sshll.u32 [#allocation10], 4
      %s74 = int_to_ptr.vmem [resolvable:$true] %s73
      %79 = dma.hbm_to_vmem [thread:$0]  %s4, 5120, %s74, [#allocation9], 320, 320, 20
    $region21: #{tpu_custom_call.1} parent=1 // pred_fallthru
      _
    // Predicated region
    $region22: #{tpu_custom_call.1} parent=1 // pred_check
      _
    $region23: #{tpu_custom_call.1} parent=1 // pred_check_branch
      %81 = sbr.rel (0) target = $region25
    $region24: #{tpu_custom_call.1} parent=1 // pred_region
      %s83 = ssub.s32 5120, 5120
      %84 = vsyncadd [#allocation12], %s83
      %s85 = sshll.u32 [#allocation11], 4
      %s86 = int_to_ptr.vmem [resolvable:$true] %s85
      %91 = dma.hbm_to_vmem [thread:$0]  %s5, 5120, %s86, [#allocation12], 320, 320, 20
    $region25: #{tpu_custom_call.1} parent=1 // pred_fallthru
      _
    // Predicated region
    $region26: #{tpu_custom_call.1} parent=1 // pred_check
      _
    $region27: #{tpu_custom_call.1} parent=1 // pred_check_branch
      %93 = sbr.rel (0) target = $region29
    $region28: #{tpu_custom_call.1} parent=1 // pred_region
      _
    $region29: #{tpu_custom_call.1} parent=1 // pred_fallthru
      _
    // Predicated region
    $region30: #{tpu_custom_call.1} parent=1 // pred_check
      _
    $region31: #{tpu_custom_call.1} parent=1 // pred_check_branch
      %95 = sbr.rel (0) target = $region33
    $region32: #{tpu_custom_call.1} parent=1 // pred_region
      %96 = dma.done [#allocation3], 256
    $region33: #{tpu_custom_call.1} parent=1 // pred_fallthru
      _
    // Predicated region
    $region34: #{tpu_custom_call.1} parent=1 // pred_check
      _
    $region35: #{tpu_custom_call.1} parent=1 // pred_check_branch
      %98 = sbr.rel (0) target = $region37
    $region36: #{tpu_custom_call.1} parent=1 // pred_region
      %99 = dma.done [#allocation6], 256
    $region37: #{tpu_custom_call.1} parent=1 // pred_fallthru
      _
    // Predicated region
    $region38: #{tpu_custom_call.1} parent=1 // pred_check
      _
    $region39: #{tpu_custom_call.1} parent=1 // pred_check_branch
      %101 = sbr.rel (0) target = $region41
    $region40: #{tpu_custom_call.1} parent=1 // pred_region
      %102 = dma.done [#allocation6], 256
    $region41: #{tpu_custom_call.1} parent=1 // pred_fallthru
      _
    // Predicated region
    $region42: #{tpu_custom_call.1} parent=1 // pred_check
      _
    $region43: #{tpu_custom_call.1} parent=1 // pred_check_branch
      %104 = sbr.rel (0) target = $region45
    $region44: #{tpu_custom_call.1} parent=1 // pred_region
      %105 = dma.done [#allocation9], 256
    $region45: #{tpu_custom_call.1} parent=1 // pred_fallthru
      _
    // Predicated region
    $region46: #{tpu_custom_call.1} parent=1 // pred_check
      _
    $region47: #{tpu_custom_call.1} parent=1 // pred_check_branch
      %107 = sbr.rel (0) target = $region49
    $region48: #{tpu_custom_call.1} parent=1 // pred_region
      %108 = dma.done [#allocation9], 5120
    $region49: #{tpu_custom_call.1} parent=1 // pred_fallthru
      _
    // Predicated region
    $region50: #{tpu_custom_call.1} parent=1 // pred_check
      _
    $region51: #{tpu_custom_call.1} parent=1 // pred_check_branch
      %110 = sbr.rel (0) target = $region53
    $region52: #{tpu_custom_call.1} parent=1 // pred_region
      %111 = dma.done [#allocation12], 5120
    $region53: #{tpu_custom_call.1} parent=1 // pred_fallthru
      _
    %v113 = vld [vmem:[#allocation2] sm:$0xff]
    %v114 = vld [vmem:[#allocation2 + $0x8] sm:$0xff]
    %v115 = vpack.c.bf16 %v114, %v113
    %v116 = vld [vmem:[#allocation10] sm:$0xff]
    %v117 = vld [vmem:[#allocation10 + $0x8] sm:$0xff]
    %v118 = vld [vmem:[#allocation10 + $0x10] sm:$0xf]
    %v119 = vld [vmem:[#allocation10 + $0x14] sm:$0xff]
    %v120 = vld [vmem:[#allocation10 + $0x1c] sm:$0xff]
    %v121 = vld [vmem:[#allocation10 + $0x24] sm:$0xf]
    %v122 = vld [vmem:[#allocation10 + $0x28] sm:$0xff]
    %v123 = vld [vmem:[#allocation10 + $0x30] sm:$0xff]
    %v124 = vld [vmem:[#allocation10 + $0x38] sm:$0xf]
    %v125 = vld [vmem:[#allocation10 + $0x3c] sm:$0xff]
    %v126 = vld [vmem:[#allocation10 + $0x44] sm:$0xff]
    %v127 = vld [vmem:[#allocation10 + $0x4c] sm:$0xf]
    %v128 = vld [vmem:[#allocation10 + $0x50] sm:$0xff]
    %v129 = vld [vmem:[#allocation10 + $0x58] sm:$0xff]
    %v130 = vld [vmem:[#allocation10 + $0x60] sm:$0xf]
    %v131 = vld [vmem:[#allocation10 + $0x64] sm:$0xff]
    %v132 = vld [vmem:[#allocation10 + $0x6c] sm:$0xff]
    %v133 = vld [vmem:[#allocation10 + $0x74] sm:$0xf]
    %v134 = vld [vmem:[#allocation10 + $0x78] sm:$0xff]
    %v135 = vld [vmem:[#allocation10 + $0x80] sm:$0xff]
    %v136 = vld [vmem:[#allocation10 + $0x88] sm:$0xf]
    %v137 = vld [vmem:[#allocation10 + $0x8c] sm:$0xff]
    %v138 = vld [vmem:[#allocation10 + $0x94] sm:$0xff]
    %v139 = vld [vmem:[#allocation10 + $0x9c] sm:$0xf]
    %v140 = vld [vmem:[#allocation10 + $0xa0] sm:$0xff]
    %v141 = vld [vmem:[#allocation10 + $0xa8] sm:$0xff]
    %v142 = vld [vmem:[#allocation10 + $0xb0] sm:$0xf]
    %v143 = vld [vmem:[#allocation10 + $0xb4] sm:$0xff]
    %v144 = vld [vmem:[#allocation10 + $0xbc] sm:$0xff]
    %v145 = vld [vmem:[#allocation10 + $0xc4] sm:$0xf]
    %v146 = vld [vmem:[#allocation10 + $0xc8] sm:$0xff]
    %v147 = vld [vmem:[#allocation10 + $0xd0] sm:$0xff]
    %v148 = vld [vmem:[#allocation10 + $0xd8] sm:$0xf]
    %v149 = vld [vmem:[#allocation10 + $0xdc] sm:$0xff]
    %v150 = vld [vmem:[#allocation10 + $0xe4] sm:$0xff]
    %v151 = vld [vmem:[#allocation10 + $0xec] sm:$0xf]
    %v152 = vld [vmem:[#allocation10 + $0xf0] sm:$0xff]
    %v153 = vld [vmem:[#allocation10 + $0xf8] sm:$0xff]
    %v154 = vld [vmem:[#allocation10 + $0x100] sm:$0xf]
    %v155 = vld [vmem:[#allocation10 + $0x104] sm:$0xff]
    %v156 = vld [vmem:[#allocation10 + $0x10c] sm:$0xff]
    %v157 = vld [vmem:[#allocation10 + $0x114] sm:$0xf]
    %v158 = vld [vmem:[#allocation10 + $0x118] sm:$0xff]
    %v159 = vld [vmem:[#allocation10 + $0x120] sm:$0xff]
    %v160 = vld [vmem:[#allocation10 + $0x128] sm:$0xf]
    %v161 = vld [vmem:[#allocation10 + $0x12c] sm:$0xff]
    %v162 = vld [vmem:[#allocation10 + $0x134] sm:$0xff]
    %v163 = vld [vmem:[#allocation10 + $0x13c] sm:$0xf]
    %v164 = vld [vmem:[#allocation7] sm:$0xff]
    %v165 = vld [vmem:[#allocation7 + $0x8] sm:$0xff]
    %v166 = vpack.c.bf16 %v165, %v164
    %v167 = vld [vmem:[#allocation11] sm:$0xff]
    %v168 = vld [vmem:[#allocation11 + $0x8] sm:$0xff]
    %v169 = vld [vmem:[#allocation11 + $0x10] sm:$0xf]
    %v170 = vld [vmem:[#allocation11 + $0x14] sm:$0xff]
    %v171 = vld [vmem:[#allocation11 + $0x1c] sm:$0xff]
    %v172 = vld [vmem:[#allocation11 + $0x24] sm:$0xf]
    %v173 = vld [vmem:[#allocation11 + $0x28] sm:$0xff]
    %v174 = vld [vmem:[#allocation11 + $0x30] sm:$0xff]
    %v175 = vld [vmem:[#allocation11 + $0x38] sm:$0xf]
    %v176 = vld [vmem:[#allocation11 + $0x3c] sm:$0xff]
    %v177 = vld [vmem:[#allocation11 + $0x44] sm:$0xff]
    %v178 = vld [vmem:[#allocation11 + $0x4c] sm:$0xf]
    %v179 = vld [vmem:[#allocation11 + $0x50] sm:$0xff]
    %v180 = vld [vmem:[#allocation11 + $0x58] sm:$0xff]
    %v181 = vld [vmem:[#allocation11 + $0x60] sm:$0xf]
    %v182 = vld [vmem:[#allocation11 + $0x64] sm:$0xff]
    %v183 = vld [vmem:[#allocation11 + $0x6c] sm:$0xff]
    %v184 = vld [vmem:[#allocation11 + $0x74] sm:$0xf]
    %v185 = vld [vmem:[#allocation11 + $0x78] sm:$0xff]
    %v186 = vld [vmem:[#allocation11 + $0x80] sm:$0xff]
    %v187 = vld [vmem:[#allocation11 + $0x88] sm:$0xf]
    %v188 = vld [vmem:[#allocation11 + $0x8c] sm:$0xff]
    %v189 = vld [vmem:[#allocation11 + $0x94] sm:$0xff]
    %v190 = vld [vmem:[#allocation11 + $0x9c] sm:$0xf]
    %v191 = vld [vmem:[#allocation11 + $0xa0] sm:$0xff]
    %v192 = vld [vmem:[#allocation11 + $0xa8] sm:$0xff]
    %v193 = vld [vmem:[#allocation11 + $0xb0] sm:$0xf]
    %v194 = vld [vmem:[#allocation11 + $0xb4] sm:$0xff]
    %v195 = vld [vmem:[#allocation11 + $0xbc] sm:$0xff]
    %v196 = vld [vmem:[#allocation11 + $0xc4] sm:$0xf]
    %v197 = vld [vmem:[#allocation11 + $0xc8] sm:$0xff]
    %v198 = vld [vmem:[#allocation11 + $0xd0] sm:$0xff]
    %v199 = vld [vmem:[#allocation11 + $0xd8] sm:$0xf]
    %v200 = vld [vmem:[#allocation11 + $0xdc] sm:$0xff]
    %v201 = vld [vmem:[#allocation11 + $0xe4] sm:$0xff]
    %v202 = vld [vmem:[#allocation11 + $0xec] sm:$0xf]
    %v203 = vld [vmem:[#allocation11 + $0xf0] sm:$0xff]
    %v204 = vld [vmem:[#allocation11 + $0xf8] sm:$0xff]
    %v205 = vld [vmem:[#allocation11 + $0x100] sm:$0xf]
    %v206 = vld [vmem:[#allocation11 + $0x104] sm:$0xff]
    %v207 = vld [vmem:[#allocation11 + $0x10c] sm:$0xff]
    %v208 = vld [vmem:[#allocation11 + $0x114] sm:$0xf]
    %v209 = vld [vmem:[#allocation11 + $0x118] sm:$0xff]
    %v210 = vld [vmem:[#allocation11 + $0x120] sm:$0xff]
    %v211 = vld [vmem:[#allocation11 + $0x128] sm:$0xf]
    %v212 = vld [vmem:[#allocation11 + $0x12c] sm:$0xff]
    %v213 = vld [vmem:[#allocation11 + $0x134] sm:$0xff]
    %v214 = vld [vmem:[#allocation11 + $0x13c] sm:$0xf]
    %v263 = vunpack.c.l.b16 %v167
    %v264 = vunpack.c.h.b16 %v167
    %v265 = vunpack.c.l.b16 %v168
    %v266 = vunpack.c.h.b16 %v168
    %v267 = vunpack.c.l.b16 %v169
    %v268 = vunpack.c.l.b16 %v170
    %v269 = vunpack.c.h.b16 %v170
    %v270 = vunpack.c.l.b16 %v171
    %v271 = vunpack.c.h.b16 %v171
    %v272 = vunpack.c.l.b16 %v172
    %v273 = vunpack.c.l.b16 %v173
    %v274 = vunpack.c.h.b16 %v173
    %v275 = vunpack.c.l.b16 %v174
    %v276 = vunpack.c.h.b16 %v174
    %v277 = vunpack.c.l.b16 %v175
    %v278 = vunpack.c.l.b16 %v176
    %v279 = vunpack.c.h.b16 %v176
    %v280 = vunpack.c.l.b16 %v177
    %v281 = vunpack.c.h.b16 %v177
    %v282 = vunpack.c.l.b16 %v178
    %v283 = vunpack.c.l.b16 %v179
    %v284 = vunpack.c.h.b16 %v179
    %v285 = vunpack.c.l.b16 %v180
    %v286 = vunpack.c.h.b16 %v180
    %v287 = vunpack.c.l.b16 %v181
    %v288 = vunpack.c.l.b16 %v182
    %v289 = vunpack.c.h.b16 %v182
    %v290 = vunpack.c.l.b16 %v183
    %v291 = vunpack.c.h.b16 %v183
    %v292 = vunpack.c.l.b16 %v184
    %v293 = vunpack.c.l.b16 %v185
    %v294 = vunpack.c.h.b16 %v185
    %v295 = vunpack.c.l.b16 %v186
    %v296 = vunpack.c.h.b16 %v186
    %v297 = vunpack.c.l.b16 %v187
    %v298 = vunpack.c.l.b16 %v188
    %v299 = vunpack.c.h.b16 %v188
    %v300 = vunpack.c.l.b16 %v189
    %v301 = vunpack.c.h.b16 %v189
    %v302 = vunpack.c.l.b16 %v190
    %v303 = vunpack.c.l.b16 %v191
    %v304 = vunpack.c.h.b16 %v191
    %v305 = vunpack.c.l.b16 %v192
    %v306 = vunpack.c.h.b16 %v192
    %v307 = vunpack.c.l.b16 %v193
    %v308 = vunpack.c.l.b16 %v194
    %v309 = vunpack.c.h.b16 %v194
    %v310 = vunpack.c.l.b16 %v195
    %v311 = vunpack.c.h.b16 %v195
    %v312 = vunpack.c.l.b16 %v196
    %v313 = vunpack.c.l.b16 %v197
    %v314 = vunpack.c.h.b16 %v197
    %v315 = vunpack.c.l.b16 %v198
    %v316 = vunpack.c.h.b16 %v198
    %v317 = vunpack.c.l.b16 %v199
    %v318 = vunpack.c.l.b16 %v200
    %v319 = vunpack.c.h.b16 %v200
    %v320 = vunpack.c.l.b16 %v201
    %v321 = vunpack.c.h.b16 %v201
    %v322 = vunpack.c.l.b16 %v202
    %v323 = vunpack.c.l.b16 %v203
    %v324 = vunpack.c.h.b16 %v203
    %v325 = vunpack.c.l.b16 %v204
    %v326 = vunpack.c.h.b16 %v204
    %v327 = vunpack.c.l.b16 %v205
    %v328 = vunpack.c.l.b16 %v206
    %v329 = vunpack.c.h.b16 %v206
    %v330 = vunpack.c.l.b16 %v207
    %v331 = vunpack.c.h.b16 %v207
    %v332 = vunpack.c.l.b16 %v208
    %v333 = vunpack.c.l.b16 %v209
    %v334 = vunpack.c.h.b16 %v209
    %v335 = vunpack.c.l.b16 %v210
    %v336 = vunpack.c.h.b16 %v210
    %v337 = vunpack.c.l.b16 %v211
    %v338 = vunpack.c.l.b16 %v212
    %v339 = vunpack.c.h.b16 %v212
    %v340 = vunpack.c.l.b16 %v213
    %v341 = vunpack.c.h.b16 %v213
    %v342 = vunpack.c.l.b16 %v214
    %v343 = vpack.c.b16 %v268, %v263
    %v344 = vpack.c.b16 %v269, %v264
    %v345 = vpack.c.b16 %v270, %v265
    %v346 = vpack.c.b16 %v271, %v266
    %v347 = vpack.c.b16 %v272, %v267
    %v348 = vpack.c.b16 %v278, %v273
    %v349 = vpack.c.b16 %v279, %v274
    %v350 = vpack.c.b16 %v280, %v275
    %v351 = vpack.c.b16 %v281, %v276
    %v352 = vpack.c.b16 %v282, %v277
    %v353 = vpack.c.b16 %v288, %v283
    %v354 = vpack.c.b16 %v289, %v284
    %v355 = vpack.c.b16 %v290, %v285
    %v356 = vpack.c.b16 %v291, %v286
    %v357 = vpack.c.b16 %v292, %v287
    %v358 = vpack.c.b16 %v298, %v293
    %v359 = vpack.c.b16 %v299, %v294
    %v360 = vpack.c.b16 %v300, %v295
    %v361 = vpack.c.b16 %v301, %v296
    %v362 = vpack.c.b16 %v302, %v297
    %v363 = vpack.c.b16 %v308, %v303
    %v364 = vpack.c.b16 %v309, %v304
    %v365 = vpack.c.b16 %v310, %v305
    %v366 = vpack.c.b16 %v311, %v306
    %v367 = vpack.c.b16 %v312, %v307
    %v368 = vpack.c.b16 %v318, %v313
    %v369 = vpack.c.b16 %v319, %v314
    %v370 = vpack.c.b16 %v320, %v315
    %v371 = vpack.c.b16 %v321, %v316
    %v372 = vpack.c.b16 %v322, %v317
    %v373 = vpack.c.b16 %v328, %v323
    %v374 = vpack.c.b16 %v329, %v324
    %v375 = vpack.c.b16 %v330, %v325
    %v376 = vpack.c.b16 %v331, %v326
    %v377 = vpack.c.b16 %v332, %v327
    %v378 = vpack.c.b16 %v338, %v333
    %v379 = vpack.c.b16 %v339, %v334
    %v380 = vpack.c.b16 %v340, %v335
    %v381 = vpack.c.b16 %v341, %v336
    %v382 = vpack.c.b16 %v342, %v337
    %423 = vmatprep.subr.bf16.mxu0 %v379
    %424 = vmatpush1.bf16.msra.mxu0 %v378
    %425 = vmatprep.subr.bf16.mxu0 %v374
    %426 = vmatpush1.bf16.msra.mxu0 %v373
    %427 = vmatprep.subr.bf16.mxu0 %v369
    %428 = vmatpush1.bf16.msra.mxu0 %v368
    %429 = vmatprep.subr.bf16.mxu0 %v364
    %430 = vmatpush1.bf16.msra.mxu0 %v363
    %431 = vmatprep.subr.bf16.mxu0 %v359
    %432 = vmatpush1.bf16.msra.mxu0 %v358
    %433 = vmatprep.subr.bf16.mxu0 %v354
    %434 = vmatpush1.bf16.msra.mxu0 %v353
    %435 = vmatprep.subr.bf16.mxu0 %v349
    %436 = vmatpush1.bf16.msra.mxu0 %v348
    %437 = vmatprep.subr.bf16.mxu0 %v344
    %438 = vmatpush1.bf16.msra.mxu0 %v343
    %439 = vmatprep.subr.bf16.mxu0 0
    %440 = vmatpush2.bf16.msra.mxu0 0
    %441 = vmatprep.subr.bf16.mxu0 0
    %442 = vmatpush2.bf16.msra.mxu0 0
    %443 = vmatprep.subr.bf16.mxu0 0
    %444 = vmatpush2.bf16.msra.mxu0 0
    %445 = vmatprep.subr.bf16.mxu0 0
    %446 = vmatpush2.bf16.msra.mxu0 0
    %447 = vmatprep.subr.bf16.mxu0 0
    %448 = vmatpush2.bf16.msra.mxu0 0
    %449 = vmatprep.subr.bf16.mxu0 0
    %450 = vmatpush2.bf16.msra.mxu0 0
    %451 = vmatprep.subr.bf16.mxu0 0
    %452 = vmatpush2.bf16.msra.mxu0 0
    %453 = vmatprep.subr.bf16.mxu0 0
    %454 = vmatpush2.bf16.msra.mxu0 0
    %455 = vmatprep.mubr.bf16.mxu0 0
    %456 = vmatmul.mubr.bf16.gmra.mxu0 %v166
    %v457 = vpop.f32.mrf.mxu0
    %v458 = vadd.f32 0.0, %v457
    %v459 = vpop.f32.mrf.mxu0
    %v460 = vadd.f32 0.0, %v459
    %v461 = vpop.f32.mrf.mxu0
    %v462 = vadd.f32 0.0, %v461
    %v463 = vpop.f32.mrf.mxu0
    %v464 = vadd.f32 0.0, %v463
    %465 = vdwg.mxu0
    %466 = vmatprep.subr.bf16.mxu0 %v381
    %467 = vmatpush1.bf16.msra.mxu0 %v380
    %468 = vmatprep.subr.bf16.mxu0 %v376
    %469 = vmatpush1.bf16.msra.mxu0 %v375
    %470 = vmatprep.subr.bf16.mxu0 %v371
    %471 = vmatpush1.bf16.msra.mxu0 %v370
    %472 = vmatprep.subr.bf16.mxu0 %v366
    %473 = vmatpush1.bf16.msra.mxu0 %v365
    %474 = vmatprep.subr.bf16.mxu0 %v361
    %475 = vmatpush1.bf16.msra.mxu0 %v360
    %476 = vmatprep.subr.bf16.mxu0 %v356
    %477 = vmatpush1.bf16.msra.mxu0 %v355
    %478 = vmatprep.subr.bf16.mxu0 %v351
    %479 = vmatpush1.bf16.msra.mxu0 %v350
    %480 = vmatprep.subr.bf16.mxu0 %v346
    %481 = vmatpush1.bf16.msra.mxu0 %v345
    %482 = vmatprep.subr.bf16.mxu0 0
    %483 = vmatpush2.bf16.msra.mxu0 0
    %484 = vmatprep.subr.bf16.mxu0 0
    %485 = vmatpush2.bf16.msra.mxu0 0
    %486 = vmatprep.subr.bf16.mxu0 0
    %487 = vmatpush2.bf16.msra.mxu0 0
    %488 = vmatprep.subr.bf16.mxu0 0
    %489 = vmatpush2.bf16.msra.mxu0 0
    %490 = vmatprep.subr.bf16.mxu0 0
    %491 = vmatpush2.bf16.msra.mxu0 0
    %492 = vmatprep.subr.bf16.mxu0 0
    %493 = vmatpush2.bf16.msra.mxu0 0
    %494 = vmatprep.subr.bf16.mxu0 0
    %495 = vmatpush2.bf16.msra.mxu0 0
    %496 = vmatprep.subr.bf16.mxu0 0
    %497 = vmatpush2.bf16.msra.mxu0 0
    %498 = vmatprep.mubr.bf16.mxu0 0
    %499 = vmatmul.mubr.bf16.gmra.mxu0 %v166
    %v500 = vpop.f32.mrf.mxu0
    %v501 = vadd.f32 0.0, %v500
    %v502 = vpop.f32.mrf.mxu0
    %v503 = vadd.f32 0.0, %v502
    %v504 = vpop.f32.mrf.mxu0
    %v505 = vadd.f32 0.0, %v504
    %v506 = vpop.f32.mrf.mxu0
    %v507 = vadd.f32 0.0, %v506
    %508 = vdwg.mxu0
    %509 = vmatprep.subr.bf16.mxu0 0
    %510 = vmatpush1.bf16.msra.mxu0 %v382
    %511 = vmatprep.subr.bf16.mxu0 0
    %512 = vmatpush1.bf16.msra.mxu0 %v377
    %513 = vmatprep.subr.bf16.mxu0 0
    %514 = vmatpush1.bf16.msra.mxu0 %v372
    %515 = vmatprep.subr.bf16.mxu0 0
    %516 = vmatpush1.bf16.msra.mxu0 %v367
    %517 = vmatprep.subr.bf16.mxu0 0
    %518 = vmatpush1.bf16.msra.mxu0 %v362
    %519 = vmatprep.subr.bf16.mxu0 0
    %520 = vmatpush1.bf16.msra.mxu0 %v357
    %521 = vmatprep.subr.bf16.mxu0 0
    %522 = vmatpush1.bf16.msra.mxu0 %v352
    %523 = vmatprep.subr.bf16.mxu0 0
    %524 = vmatpush1.bf16.msra.mxu0 %v347
    %525 = vmatprep.subr.bf16.mxu0 0
    %526 = vmatpush2.bf16.msra.mxu0 0
    %527 = vmatprep.subr.bf16.mxu0 0
    %528 = vmatpush2.bf16.msra.mxu0 0
    %529 = vmatprep.subr.bf16.mxu0 0
    %530 = vmatpush2.bf16.msra.mxu0 0
    %531 = vmatprep.subr.bf16.mxu0 0
    %532 = vmatpush2.bf16.msra.mxu0 0
    %533 = vmatprep.subr.bf16.mxu0 0
    %534 = vmatpush2.bf16.msra.mxu0 0
    %535 = vmatprep.subr.bf16.mxu0 0
    %536 = vmatpush2.bf16.msra.mxu0 0
    %537 = vmatprep.subr.bf16.mxu0 0
    %538 = vmatpush2.bf16.msra.mxu0 0
    %539 = vmatprep.subr.bf16.mxu0 0
    %540 = vmatpush2.bf16.msra.mxu0 0
    %541 = vmatprep.mubr.bf16.mxu0 0
    %542 = vmatmul.mubr.bf16.gmra.mxu0 %v166
    %v543 = vpop.f32.mrf.mxu0
    %v544 = vadd.f32 0.0, %v543
    %v545 = vpop.f32.mrf.mxu0
    %v546 = vpop.f32.mrf.mxu0
    %v547 = vadd.f32 0.0, %v546
    %v548 = vpop.f32.mrf.mxu0
    %549 = vdwg.mxu0
    %v598 = vunpack.c.l.b16 %v116
    %v599 = vunpack.c.h.b16 %v116
    %v600 = vunpack.c.l.b16 %v117
    %v601 = vunpack.c.h.b16 %v117
    %v602 = vunpack.c.l.b16 %v118
    %v603 = vunpack.c.l.b16 %v119
    %v604 = vunpack.c.h.b16 %v119
    %v605 = vunpack.c.l.b16 %v120
    %v606 = vunpack.c.h.b16 %v120
    %v607 = vunpack.c.l.b16 %v121
    %v608 = vunpack.c.l.b16 %v122
    %v609 = vunpack.c.h.b16 %v122
    %v610 = vunpack.c.l.b16 %v123
    %v611 = vunpack.c.h.b16 %v123
    %v612 = vunpack.c.l.b16 %v124
    %v613 = vunpack.c.l.b16 %v125
    %v614 = vunpack.c.h.b16 %v125
    %v615 = vunpack.c.l.b16 %v126
    %v616 = vunpack.c.h.b16 %v126
    %v617 = vunpack.c.l.b16 %v127
    %v618 = vunpack.c.l.b16 %v128
    %v619 = vunpack.c.h.b16 %v128
    %v620 = vunpack.c.l.b16 %v129
    %v621 = vunpack.c.h.b16 %v129
    %v622 = vunpack.c.l.b16 %v130
    %v623 = vunpack.c.l.b16 %v131
    %v624 = vunpack.c.h.b16 %v131
    %v625 = vunpack.c.l.b16 %v132
    %v626 = vunpack.c.h.b16 %v132
    %v627 = vunpack.c.l.b16 %v133
    %v628 = vunpack.c.l.b16 %v134
    %v629 = vunpack.c.h.b16 %v134
    %v630 = vunpack.c.l.b16 %v135
    %v631 = vunpack.c.h.b16 %v135
    %v632 = vunpack.c.l.b16 %v136
    %v633 = vunpack.c.l.b16 %v137
    %v634 = vunpack.c.h.b16 %v137
    %v635 = vunpack.c.l.b16 %v138
    %v636 = vunpack.c.h.b16 %v138
    %v637 = vunpack.c.l.b16 %v139
    %v638 = vunpack.c.l.b16 %v140
    %v639 = vunpack.c.h.b16 %v140
    %v640 = vunpack.c.l.b16 %v141
    %v641 = vunpack.c.h.b16 %v141
    %v642 = vunpack.c.l.b16 %v142
    %v643 = vunpack.c.l.b16 %v143
    %v644 = vunpack.c.h.b16 %v143
    %v645 = vunpack.c.l.b16 %v144
    %v646 = vunpack.c.h.b16 %v144
    %v647 = vunpack.c.l.b16 %v145
    %v648 = vunpack.c.l.b16 %v146
    %v649 = vunpack.c.h.b16 %v146
    %v650 = vunpack.c.l.b16 %v147
    %v651 = vunpack.c.h.b16 %v147
    %v652 = vunpack.c.l.b16 %v148
    %v653 = vunpack.c.l.b16 %v149
    %v654 = vunpack.c.h.b16 %v149
    %v655 = vunpack.c.l.b16 %v150
    %v656 = vunpack.c.h.b16 %v150
    %v657 = vunpack.c.l.b16 %v151
    %v658 = vunpack.c.l.b16 %v152
    %v659 = vunpack.c.h.b16 %v152
    %v660 = vunpack.c.l.b16 %v153
    %v661 = vunpack.c.h.b16 %v153
    %v662 = vunpack.c.l.b16 %v154
    %v663 = vunpack.c.l.b16 %v155
    %v664 = vunpack.c.h.b16 %v155
    %v665 = vunpack.c.l.b16 %v156
    %v666 = vunpack.c.h.b16 %v156
    %v667 = vunpack.c.l.b16 %v157
    %v668 = vunpack.c.l.b16 %v158
    %v669 = vunpack.c.h.b16 %v158
    %v670 = vunpack.c.l.b16 %v159
    %v671 = vunpack.c.h.b16 %v159
    %v672 = vunpack.c.l.b16 %v160
    %v673 = vunpack.c.l.b16 %v161
    %v674 = vunpack.c.h.b16 %v161
    %v675 = vunpack.c.l.b16 %v162
    %v676 = vunpack.c.h.b16 %v162
    %v677 = vunpack.c.l.b16 %v163
    %v678 = vpack.c.b16 %v603, %v598
    %v679 = vpack.c.b16 %v604, %v599
    %v680 = vpack.c.b16 %v605, %v600
    %v681 = vpack.c.b16 %v606, %v601
    %v682 = vpack.c.b16 %v607, %v602
    %v683 = vpack.c.b16 %v613, %v608
    %v684 = vpack.c.b16 %v614, %v609
    %v685 = vpack.c.b16 %v615, %v610
    %v686 = vpack.c.b16 %v616, %v611
    %v687 = vpack.c.b16 %v617, %v612
    %v688 = vpack.c.b16 %v623, %v618
    %v689 = vpack.c.b16 %v624, %v619
    %v690 = vpack.c.b16 %v625, %v620
    %v691 = vpack.c.b16 %v626, %v621
    %v692 = vpack.c.b16 %v627, %v622
    %v693 = vpack.c.b16 %v633, %v628
    %v694 = vpack.c.b16 %v634, %v629
    %v695 = vpack.c.b16 %v635, %v630
    %v696 = vpack.c.b16 %v636, %v631
    %v697 = vpack.c.b16 %v637, %v632
    %v698 = vpack.c.b16 %v643, %v638
    %v699 = vpack.c.b16 %v644, %v639
    %v700 = vpack.c.b16 %v645, %v640
    %v701 = vpack.c.b16 %v646, %v641
    %v702 = vpack.c.b16 %v647, %v642
    %v703 = vpack.c.b16 %v653, %v648
    %v704 = vpack.c.b16 %v654, %v649
    %v705 = vpack.c.b16 %v655, %v650
    %v706 = vpack.c.b16 %v656, %v651
    %v707 = vpack.c.b16 %v657, %v652
    %v708 = vpack.c.b16 %v663, %v658
    %v709 = vpack.c.b16 %v664, %v659
    %v710 = vpack.c.b16 %v665, %v660
    %v711 = vpack.c.b16 %v666, %v661
    %v712 = vpack.c.b16 %v667, %v662
    %v713 = vpack.c.b16 %v673, %v668
    %v714 = vpack.c.b16 %v674, %v669
    %v715 = vpack.c.b16 %v675, %v670
    %v716 = vpack.c.b16 %v676, %v671
    %v717 = vpack.c.b16 %v677, %v672
    %758 = vmatprep.subr.bf16.mxu0 %v714
    %759 = vmatpush1.bf16.msra.mxu0 %v713
    %760 = vmatprep.subr.bf16.mxu0 %v709
    %761 = vmatpush1.bf16.msra.mxu0 %v708
    %762 = vmatprep.subr.bf16.mxu0 %v704
    %763 = vmatpush1.bf16.msra.mxu0 %v703
    %764 = vmatprep.subr.bf16.mxu0 %v699
    %765 = vmatpush1.bf16.msra.mxu0 %v698
    %766 = vmatprep.subr.bf16.mxu0 %v694
    %767 = vmatpush1.bf16.msra.mxu0 %v693
    %768 = vmatprep.subr.bf16.mxu0 %v689
    %769 = vmatpush1.bf16.msra.mxu0 %v688
    %770 = vmatprep.subr.bf16.mxu0 %v684
    %771 = vmatpush1.bf16.msra.mxu0 %v683
    %772 = vmatprep.subr.bf16.mxu0 %v679
    %773 = vmatpush1.bf16.msra.mxu0 %v678
    %774 = vmatprep.subr.bf16.mxu0 0
    %775 = vmatpush2.bf16.msra.mxu0 0
    %776 = vmatprep.subr.bf16.mxu0 0
    %777 = vmatpush2.bf16.msra.mxu0 0
    %778 = vmatprep.subr.bf16.mxu0 0
    %779 = vmatpush2.bf16.msra.mxu0 0
    %780 = vmatprep.subr.bf16.mxu0 0
    %781 = vmatpush2.bf16.msra.mxu0 0
    %782 = vmatprep.subr.bf16.mxu0 0
    %783 = vmatpush2.bf16.msra.mxu0 0
    %784 = vmatprep.subr.bf16.mxu0 0
    %785 = vmatpush2.bf16.msra.mxu0 0
    %786 = vmatprep.subr.bf16.mxu0 0
    %787 = vmatpush2.bf16.msra.mxu0 0
    %788 = vmatprep.subr.bf16.mxu0 0
    %789 = vmatpush2.bf16.msra.mxu0 0
    %790 = vmatprep.mubr.bf16.mxu0 0
    %791 = vmatmul.mubr.bf16.gmra.mxu0 %v115
    %v792 = vpop.f32.mrf.mxu0
    %v793 = vadd.f32 %v458, %v792
    %v794 = vpop.f32.mrf.mxu0
    %v795 = vadd.f32 %v460, %v794
    %v796 = vpop.f32.mrf.mxu0
    %v797 = vadd.f32 %v462, %v796
    %v798 = vpop.f32.mrf.mxu0
    %v799 = vadd.f32 %v464, %v798
    %800 = vdwg.mxu0
    %801 = vmatprep.subr.bf16.mxu0 %v716
    %802 = vmatpush1.bf16.msra.mxu0 %v715
    %803 = vmatprep.subr.bf16.mxu0 %v711
    %804 = vmatpush1.bf16.msra.mxu0 %v710
    %805 = vmatprep.subr.bf16.mxu0 %v706
    %806 = vmatpush1.bf16.msra.mxu0 %v705
    %807 = vmatprep.subr.bf16.mxu0 %v701
    %808 = vmatpush1.bf16.msra.mxu0 %v700
    %809 = vmatprep.subr.bf16.mxu0 %v696
    %810 = vmatpush1.bf16.msra.mxu0 %v695
    %811 = vmatprep.subr.bf16.mxu0 %v691
    %812 = vmatpush1.bf16.msra.mxu0 %v690
    %813 = vmatprep.subr.bf16.mxu0 %v686
    %814 = vmatpush1.bf16.msra.mxu0 %v685
    %815 = vmatprep.subr.bf16.mxu0 %v681
    %816 = vmatpush1.bf16.msra.mxu0 %v680
    %817 = vmatprep.subr.bf16.mxu0 0
    %818 = vmatpush2.bf16.msra.mxu0 0
    %819 = vmatprep.subr.bf16.mxu0 0
    %820 = vmatpush2.bf16.msra.mxu0 0
    %821 = vmatprep.subr.bf16.mxu0 0
    %822 = vmatpush2.bf16.msra.mxu0 0
    %823 = vmatprep.subr.bf16.mxu0 0
    %824 = vmatpush2.bf16.msra.mxu0 0
    %825 = vmatprep.subr.bf16.mxu0 0
    %826 = vmatpush2.bf16.msra.mxu0 0
    %827 = vmatprep.subr.bf16.mxu0 0
    %828 = vmatpush2.bf16.msra.mxu0 0
    %829 = vmatprep.subr.bf16.mxu0 0
    %830 = vmatpush2.bf16.msra.mxu0 0
    %831 = vmatprep.subr.bf16.mxu0 0
    %832 = vmatpush2.bf16.msra.mxu0 0
    %833 = vmatprep.mubr.bf16.mxu0 0
    %834 = vmatmul.mubr.bf16.gmra.mxu0 %v115
    %v835 = vpop.f32.mrf.mxu0
    %v836 = vadd.f32 %v501, %v835
    %v837 = vpop.f32.mrf.mxu0
    %v838 = vadd.f32 %v503, %v837
    %v839 = vpop.f32.mrf.mxu0
    %v840 = vadd.f32 %v505, %v839
    %v841 = vpop.f32.mrf.mxu0
    %v842 = vadd.f32 %v507, %v841
    %843 = vdwg.mxu0
    %844 = vmatprep.subr.bf16.mxu0 0
    %845 = vmatpush1.bf16.msra.mxu0 %v717
    %846 = vmatprep.subr.bf16.mxu0 0
    %847 = vmatpush1.bf16.msra.mxu0 %v712
    %848 = vmatprep.subr.bf16.mxu0 0
    %849 = vmatpush1.bf16.msra.mxu0 %v707
    %850 = vmatprep.subr.bf16.mxu0 0
    %851 = vmatpush1.bf16.msra.mxu0 %v702
    %852 = vmatprep.subr.bf16.mxu0 0
    %853 = vmatpush1.bf16.msra.mxu0 %v697
    %854 = vmatprep.subr.bf16.mxu0 0
    %855 = vmatpush1.bf16.msra.mxu0 %v692
    %856 = vmatprep.subr.bf16.mxu0 0
    %857 = vmatpush1.bf16.msra.mxu0 %v687
    %858 = vmatprep.subr.bf16.mxu0 0
    %859 = vmatpush1.bf16.msra.mxu0 %v682
    %860 = vmatprep.subr.bf16.mxu0 0
    %861 = vmatpush2.bf16.msra.mxu0 0
    %862 = vmatprep.subr.bf16.mxu0 0
    %863 = vmatpush2.bf16.msra.mxu0 0
    %864 = vmatprep.subr.bf16.mxu0 0
    %865 = vmatpush2.bf16.msra.mxu0 0
    %866 = vmatprep.subr.bf16.mxu0 0
    %867 = vmatpush2.bf16.msra.mxu0 0
    %868 = vmatprep.subr.bf16.mxu0 0
    %869 = vmatpush2.bf16.msra.mxu0 0
    %870 = vmatprep.subr.bf16.mxu0 0
    %871 = vmatpush2.bf16.msra.mxu0 0
    %872 = vmatprep.subr.bf16.mxu0 0
    %873 = vmatpush2.bf16.msra.mxu0 0
    %874 = vmatprep.subr.bf16.mxu0 0
    %875 = vmatpush2.bf16.msra.mxu0 0
    %876 = vmatprep.mubr.bf16.mxu0 0
    %877 = vmatmul.mubr.bf16.gmra.mxu0 %v115
    %v878 = vpop.f32.mrf.mxu0
    %v879 = vadd.f32 %v544, %v878
    %v880 = vpop.f32.mrf.mxu0
    %v881 = vpop.f32.mrf.mxu0
    %v882 = vadd.f32 %v547, %v881
    %v883 = vpop.f32.mrf.mxu0
    %884 = vdwg.mxu0
    %v885 = vld [vmem:[%s6] sm:$0x1f]
    %v886 = vunpack.c.l.bf16 %v885
    %v887 = vunpack.c.h.bf16 %v885
    %v890 = vlaneseq
    %v891 = vshrl.u32 %v890, 7
    %v892 = vsub.s32 0, %v891
    %v893 = vrot.slane %v886, %v892
    %v894 = vlaneseq
    %v895 = vshrl.u32 %v894, 7
    %v896 = vsub.s32 2, %v895
    %v897 = vrot.slane %v886, %v896
    %v898 = vlaneseq
    %v899 = vshrl.u32 %v898, 7
    %v900 = vsub.s32 4, %v899
    %v901 = vrot.slane %v886, %v900
    %v902 = vlaneseq
    %v903 = vshrl.u32 %v902, 7
    %v904 = vsub.s32 6, %v903
    %v905 = vrot.slane %v886, %v904
    %v906 = vlaneseq
    %v907 = vshrl.u32 %v906, 7
    %v908 = vsub.s32 0, %v907
    %v909 = vrot.slane %v887, %v908
    %v915 = vlaneseq
    %v916 = vshrl.u32 %v915, 7
    %v917 = vsub.s32 0, %v916
    %v918 = vrot.slane %v893, %v917
    %v919 = vlaneseq
    %v920 = vshrl.u32 %v919, 7
    %v921 = vsub.s32 0, %v920
    %v922 = vrot.slane %v897, %v921
    %v923 = vlaneseq
    %v924 = vshrl.u32 %v923, 7
    %v925 = vsub.s32 0, %v924
    %v926 = vrot.slane %v901, %v925
    %v927 = vlaneseq
    %v928 = vshrl.u32 %v927, 7
    %v929 = vsub.s32 0, %v928
    %v930 = vrot.slane %v905, %v929
    %v931 = vlaneseq
    %v932 = vshrl.u32 %v931, 7
    %v933 = vsub.s32 0, %v932
    %v934 = vrot.slane %v909, %v933
    %v935 = vadd.f32 %v793, %v918
    %v936 = vadd.f32 %v795, %v922
    %v937 = vadd.f32 %v836, %v926
    %v938 = vadd.f32 %v838, %v930
    %v939 = vadd.f32 %v879, %v934
    %v940 = vadd.f32 %v797, %v918
    %v941 = vadd.f32 %v799, %v922
    %v942 = vadd.f32 %v840, %v926
    %v943 = vadd.f32 %v842, %v930
    %v944 = vadd.f32 %v882, %v934
    %v945 = vld [vmem:[#allocation5] sm:$0xff]
    %v946 = vld [vmem:[#allocation5 + $0x8] sm:$0xff]
    %v947 = vld [vmem:[#allocation8] sm:$0xff]
    %v948 = vld [vmem:[#allocation8 + $0x8] sm:$0xff]
    %v949 = vxor.u32 %v935, 2147483648
    %v950 = vxor.u32 %v940, 2147483648
    %v951 = vmul.f32 %v949, 1.442695
    %v952 = vpow.pop %v951
    %v953 = vmul.f32 %v950, 1.442695
    %v954 = vpow.pop %v953
    %v955 = vadd.f32 %v952, 1.0
    %v956 = vadd.f32 %v954, 1.0
    %v957 = vrcp.pop %v955
    %v958 = vmul.f32 1.0, %v957
    %v959 = vrcp.pop %v956
    %v960 = vmul.f32 1.0, %v959
    %v961 = vtanh.pop %v939
    %v962 = vtanh.pop %v944
    %v963 = vmul.f32 %v958, %v961
    %v964 = vmul.f32 %v960, %v962
    %v965 = vxor.u32 %v936, 2147483648
    %v966 = vxor.u32 %v941, 2147483648
    %v967 = vmul.f32 %v965, 1.442695
    %v968 = vpow.pop %v967
    %v969 = vmul.f32 %v966, 1.442695
    %v970 = vpow.pop %v969
    %v971 = vadd.f32 %v968, 1.0
    %v972 = vadd.f32 %v970, 1.0
    %v973 = vrcp.pop %v971
    %v974 = vmul.f32 1.0, %v973
    %v975 = vrcp.pop %v972
    %v976 = vmul.f32 1.0, %v975
    %v977 = vmul.f32 %v974, %v945
    %v978 = vmul.f32 %v976, %v946
    %v979 = vadd.f32 %v963, %v977
    %v980 = vadd.f32 %v964, %v978
    %v981 = vxor.u32 %v937, 2147483648
    %v982 = vxor.u32 %v942, 2147483648
    %v983 = vmul.f32 %v981, 1.442695
    %v984 = vpow.pop %v983
    %v985 = vmul.f32 %v982, 1.442695
    %v986 = vpow.pop %v985
    %v987 = vadd.f32 %v984, 1.0
    %v988 = vadd.f32 %v986, 1.0
    %v989 = vrcp.pop %v987
    %v990 = vmul.f32 1.0, %v989
    %v991 = vrcp.pop %v988
    %v992 = vmul.f32 1.0, %v991
    %v993 = vmul.f32 %v990, %v947
    %v994 = vmul.f32 %v992, %v948
    %v995 = vadd.f32 %v979, %v993
    %v996 = vadd.f32 %v980, %v994
    %v997 = vxor.u32 %v938, 2147483648
    %v998 = vxor.u32 %v943, 2147483648
    %v999 = vmul.f32 %v997, 1.442695
    %v1000 = vpow.pop %v999
    %v1001 = vmul.f32 %v998, 1.442695
    %v1002 = vpow.pop %v1001
    %v1003 = vadd.f32 %v1000, 1.0
    %v1004 = vadd.f32 %v1002, 1.0
    %v1005 = vrcp.pop %v1003
    %v1006 = vmul.f32 1.0, %v1005
    %v1007 = vrcp.pop %v1004
    %v1008 = vmul.f32 1.0, %v1007
    %v1009 = vtanh.pop %v995
    %v1010 = vtanh.pop %v996
    %v1011 = vmul.f32 %v1006, %v1009
    %v1012 = vmul.f32 %v1008, %v1010
    %v1013 = vpack.c.bf16 %v1012, %v1011
    %v1015 = vunpack.c.l.b16 %v1013
    %v1016 = vunpack.c.h.b16 %v1013
    %v1017 = vpack.c.b16 %v1015, %v1015
    %v1018 = vpack.c.b16 %v1016, %v1016
    %1021 = vst [vmem:[#allocation13] sm:$0xf] %v1017
    %1022 = vst [vmem:[#allocation13 + $0x4] sm:$0xf] %v1018
    %1023 = vst [vmem:[#allocation14] sm:$0xff] %v995
    %1024 = vst [vmem:[#allocation14 + $0x8] sm:$0xff] %v996
    // Predicated region
    $region54: #{tpu_custom_call.1} parent=1 // pred_check
      _
    $region55: #{tpu_custom_call.1} parent=1 // pred_check_branch
      %1026 = sbr.rel (0) target = $region57
    $region56: #{tpu_custom_call.1} parent=1 // pred_region
      %s1028 = ssub.s32 128, 128
      %1029 = vsyncadd [#allocation4], %s1028
      %s1030 = sshll.u32 [#allocation13], 4
      %s1031 = int_to_ptr.vmem [resolvable:$true] %s1030
      %1036 = dma.vmem_to_hbm [thread:$0]  %s1031, 128, %s7, [#allocation4], 64, 64, 4
    $region57: #{tpu_custom_call.1} parent=1 // pred_fallthru
      _
    // Predicated region
    $region58: #{tpu_custom_call.1} parent=1 // pred_check
      _
    $region59: #{tpu_custom_call.1} parent=1 // pred_check_branch
      %1038 = sbr.rel (0) target = $region61
    $region60: #{tpu_custom_call.1} parent=1 // pred_region
      %s1040 = ssub.s32 256, 256
      %1041 = vsyncadd [#allocation15], %s1040
      %s1042 = sshll.u32 [#allocation14], 4
      %s1043 = int_to_ptr.vmem [resolvable:$true] %s1042
      %1048 = dma.vmem_to_hbm [thread:$0]  %s1043, 256, %s8, [#allocation15], 128, 128, 8
    $region61: #{tpu_custom_call.1} parent=1 // pred_fallthru
      _
    // Predicated region
    $region62: #{tpu_custom_call.1} parent=1 // pred_check
      _
    $region63: #{tpu_custom_call.1} parent=1 // pred_check_branch
      %1050 = sbr.rel (0) target = $region65
    $region64: #{tpu_custom_call.1} parent=1 // pred_region
      %1051 = dma.done [#allocation4], 128
    $region65: #{tpu_custom_call.1} parent=1 // pred_fallthru
      _
    // Predicated region
    $region66: #{tpu_custom_call.1} parent=1 // pred_check
      _
    $region67: #{tpu_custom_call.1} parent=1 // pred_check_branch
      %1053 = sbr.rel (0) target = $region69
    $region68: #{tpu_custom_call.1} parent=1 // pred_region
      %1054 = dma.done [#allocation15], 256
    $region69: #{tpu_custom_call.1} parent=1 // pred_fallthru
      _
    %1055 = vsyncpa [#allocation3], 1
    %1056 = vsyncpa [#allocation6], 1
    %1057 = vsyncpa [#allocation9], 1
    %1058 = vsyncpa [#allocation12], 1
    %1059 = vsyncpa [#allocation4], 1
    %1060 = vsyncpa [#allocation15], 1

// kernel: tpu_custom_call.1
$region0: #{tpu_custom_call.1}
  #allocation0 [shape = 'u32[]', space=smem, size = 0x4, offset = 0x4, fixed_abs, tag = 'smem constant byte address 0x4 - core index']
  #allocation1 [shape = 'u32[144,128]{1,0:T(1,128)}', space=vmem, size = 0x12000, scoped, tag = 'internal scratch']
  %s0 = inlined_call_operand.hbm [shape: f32[16,128], index: 0, kind: input, shape index: {}]
  %s1 = inlined_call_operand.hbm [shape: f32[16,128], index: 1, kind: input, shape index: {}]
  %s2 = inlined_call_operand.hbm [shape: f32[16,128], index: 2, kind: input, shape index: {}]
  %s3 = inlined_call_operand.hbm [shape: f32[16,128], index: 3, kind: input, shape index: {}]
  %s4 = inlined_call_operand.hbm [shape: bf16[128,640], index: 4, kind: input, shape index: {}]
  %s5 = inlined_call_operand.hbm [shape: bf16[128,640], index: 5, kind: input, shape index: {}]
  %s6 = inlined_call_operand.vmem [shape: bf16[1,640], index: 6, kind: input, shape index: {}]
  %s7 = inlined_call_operand.hbm [shape: bf16[16,128], index: 7, kind: output, shape index: {0}]
  %s8 = inlined_call_operand.hbm [shape: f32[16,128], index: 8, kind: output, shape index: {1}]
  %9 = xla_tuple %s7, %s8
  %s10 = sld [smem:[#allocation0]]
  $region70: #{tpu_custom_call.1} parent=0
    _
  %s12 = ssub.s32 1, %s10
  %s13 = scalar_select 0, %s12, %s10
  $region1: #{tpu_custom_call.1} parent=0
    #allocation2 [shape = 'u8[8192]{0}', space=vmem, size = 0x2000, scoped, tag = 'input window, operand 0, single buffered']
    #allocation3 [shape = 's32[1]{0}', space=sflag, size = 0x4, scoped, tag = 'scoped memory for tpu_custom_call.1']
    #allocation4 [shape = 's32[1]{0}', space=sflag, size = 0x4, scoped, tag = 'scoped memory for tpu_custom_call.1']
    #allocation5 [shape = 'u8[8192]{0}', space=vmem, size = 0x2000, scoped, tag = 'input window, operand 1, single buffered']
    #allocation6 [shape = 's32[1]{0}', space=sflag, size = 0x4, scoped, tag = 'scoped memory for tpu_custom_call.1']
    #allocation7 [shape = 'u8[8192]{0}', space=vmem, size = 0x2000, scoped, tag = 'input window, operand 2, single buffered']
    #allocation8 [shape = 'u8[8192]{0}', space=vmem, size = 0x2000, scoped, tag = 'input window, operand 3, single buffered']
    #allocation9 [shape = 's32[1]{0}', space=sflag, size = 0x4, scoped, tag = 'scoped memory for tpu_custom_call.1']
    #allocation10 [shape = 'u8[163840]{0}', space=vmem, size = 0x28000, scoped, tag = 'input window, operand 4, single buffered']
    #allocation11 [shape = 'u8[163840]{0}', space=vmem, size = 0x28000, scoped, tag = 'input window, operand 5, single buffered']
    #allocation12 [shape = 's32[1]{0}', space=sflag, size = 0x4, scoped, tag = 'scoped memory for tpu_custom_call.1']
    #allocation13 [shape = 'u8[4096]{0}', space=vmem, size = 0x1000, scoped, tag = 'output window, operand 0, single buffered']
    #allocation14 [shape = 'u8[8192]{0}', space=vmem, size = 0x2000, scoped, tag = 'output window, operand 1, single buffered']
    #allocation15 [shape = 's32[1]{0}', space=sflag, size = 0x4, scoped, tag = 'scoped memory for tpu_custom_call.1']
    %14 = vsyncpa [#allocation3], 0
    %15 = vsyncpa [#allocation6], 0
    %16 = vsyncpa [#allocation9], 0
    %17 = vsyncpa [#allocation12], 0
    %18 = vsyncpa [#allocation4], 0
    %19 = vsyncpa [#allocation15], 0
    // Predicated region
    $region2: #{tpu_custom_call.1} parent=1 // pred_check
      _
    $region3: #{tpu_custom_call.1} parent=1 // pred_check_branch
      %21 = sbr.rel (0) target = $region5
    $region4: #{tpu_custom_call.1} parent=1 // pred_region
      %s23 = ssub.s32 256, 256
      %24 = vsyncadd [#allocation3], %s23
      %s25 = sshll.u32 [#allocation2], 4
      %s26 = int_to_ptr.vmem [resolvable:$true] %s25
      %31 = dma.hbm_to_vmem [thread:$0]  %s0, 256, %s26, [#allocation3], 128, 128, 8
    $region5: #{tpu_custom_call.1} parent=1 // pred_fallthru
      _
    // Predicated region
    $region6: #{tpu_custom_call.1} parent=1 // pred_check
      _
    $region7: #{tpu_custom_call.1} parent=1 // pred_check_branch
      %33 = sbr.rel (0) target = $region9
    $region8: #{tpu_custom_call.1} parent=1 // pred_region
      %s35 = ssub.s32 256, 256
      %36 = vsyncadd [#allocation6], %s35
      %s37 = sshll.u32 [#allocation5], 4
      %s38 = int_to_ptr.vmem [resolvable:$true] %s37
      %43 = dma.hbm_to_vmem [thread:$0]  %s1, 256, %s38, [#allocation6], 128, 128, 8
    $region9: #{tpu_custom_call.1} parent=1 // pred_fallthru
      _
    // Predicated region
    $region10: #{tpu_custom_call.1} parent=1 // pred_check
      _
    $region11: #{tpu_custom_call.1} parent=1 // pred_check_branch
      %45 = sbr.rel (0) target = $region13
    $region12: #{tpu_custom_call.1} parent=1 // pred_region
      %s47 = ssub.s32 256, 256
      %48 = vsyncadd [#allocation6], %s47
      %s49 = sshll.u32 [#allocation7], 4
      %s50 = int_to_ptr.vmem [resolvable:$true] %s49
      %55 = dma.hbm_to_vmem [thread:$0]  %s2, 256, %s50, [#allocation6], 128, 128, 8
    $region13: #{tpu_custom_call.1} parent=1 // pred_fallthru
      _
    // Predicated region
    $region14: #{tpu_custom_call.1} parent=1 // pred_check
      _
    $region15: #{tpu_custom_call.1} parent=1 // pred_check_branch
      %57 = sbr.rel (0) target = $region17
    $region16: #{tpu_custom_call.1} parent=1 // pred_region
      %s59 = ssub.s32 256, 256
      %60 = vsyncadd [#allocation9], %s59
      %s61 = sshll.u32 [#allocation8], 4
      %s62 = int_to_ptr.vmem [resolvable:$true] %s61
      %67 = dma.hbm_to_vmem [thread:$0]  %s3, 256, %s62, [#allocation9], 128, 128, 8
    $region17: #{tpu_custom_call.1} parent=1 // pred_fallthru
      _
    // Predicated region
    $region18: #{tpu_custom_call.1} parent=1 // pred_check
      _
    $region19: #{tpu_custom_call.1} parent=1 // pred_check_branch
      %69 = sbr.rel (0) target = $region21
    $region20: #{tpu_custom_call.1} parent=1 // pred_region
      %s71 = ssub.s32 5120, 5120
      %72 = vsyncadd [#allocation9], %s71
      %s73 = sshll.u32 [#allocation10], 4
      %s74 = int_to_ptr.vmem [resolvable:$true] %s73
      %79 = dma.hbm_to_vmem [thread:$0]  %s4, 5120, %s74, [#allocation9], 320, 320, 20
    $region21: #{tpu_custom_call.1} parent=1 // pred_fallthru
      _
    // Predicated region
    $region22: #{tpu_custom_call.1} parent=1 // pred_check
      _
    $region23: #{tpu_custom_call.1} parent=1 // pred_check_branch
      %81 = sbr.rel (0) target = $region25
    $region24: #{tpu_custom_call.1} parent=1 // pred_region
      %s83 = ssub.s32 5120, 5120
      %84 = vsyncadd [#allocation12], %s83
      %s85 = sshll.u32 [#allocation11], 4
      %s86 = int_to_ptr.vmem [resolvable:$true] %s85
      %91 = dma.hbm_to_vmem [thread:$0]  %s5, 5120, %s86, [#allocation12], 320, 320, 20
    $region25: #{tpu_custom_call.1} parent=1 // pred_fallthru
      _
    // Predicated region
    $region26: #{tpu_custom_call.1} parent=1 // pred_check
      _
    $region27: #{tpu_custom_call.1} parent=1 // pred_check_branch
      %93 = sbr.rel (0) target = $region29
    $region28: #{tpu_custom_call.1} parent=1 // pred_region
      _
    $region29: #{tpu_custom_call.1} parent=1 // pred_fallthru
      _
    // Predicated region
    $region30: #{tpu_custom_call.1} parent=1 // pred_check
      _
    $region31: #{tpu_custom_call.1} parent=1 // pred_check_branch
      %95 = sbr.rel (0) target = $region33
    $region32: #{tpu_custom_call.1} parent=1 // pred_region
      %96 = dma.done [#allocation3], 256
    $region33: #{tpu_custom_call.1} parent=1 // pred_fallthru
      _
    // Predicated region
    $region34: #{tpu_custom_call.1} parent=1 // pred_check
      _
    $region35: #{tpu_custom_call.1} parent=1 // pred_check_branch
      %98 = sbr.rel (0) target = $region37
    $region36: #{tpu_custom_call.1} parent=1 // pred_region
      %99 = dma.done [#allocation6], 256
    $region37: #{tpu_custom_call.1} parent=1 // pred_fallthru
      _
    // Predicated region
    $region38: #{tpu_custom_call.1} parent=1 // pred_check
      _
    $region39: #{tpu_custom_call.1} parent=1 // pred_check_branch
      %101 = sbr.rel (0) target = $region41
    $region40: #{tpu_custom_call.1} parent=1 // pred_region
      %102 = dma.done [#allocation6], 256
    $region41: #{tpu_custom_call.1} parent=1 // pred_fallthru
      _
    // Predicated region
    $region42: #{tpu_custom_call.1} parent=1 // pred_check
      _
    $region43: #{tpu_custom_call.1} parent=1 // pred_check_branch
      %104 = sbr.rel (0) target = $region45
    $region44: #{tpu_custom_call.1} parent=1 // pred_region
      %105 = dma.done [#allocation9], 256
    $region45: #{tpu_custom_call.1} parent=1 // pred_fallthru
      _
    // Predicated region
    $region46: #{tpu_custom_call.1} parent=1 // pred_check
      _
    $region47: #{tpu_custom_call.1} parent=1 // pred_check_branch
      %107 = sbr.rel (0) target = $region49
    $region48: #{tpu_custom_call.1} parent=1 // pred_region
      %108 = dma.done [#allocation9], 5120
    $region49: #{tpu_custom_call.1} parent=1 // pred_fallthru
      _
    // Predicated region
    $region50: #{tpu_custom_call.1} parent=1 // pred_check
      _
    $region51: #{tpu_custom_call.1} parent=1 // pred_check_branch
      %110 = sbr.rel (0) target = $region53
    $region52: #{tpu_custom_call.1} parent=1 // pred_region
      %111 = dma.done [#allocation12], 5120
    $region53: #{tpu_custom_call.1} parent=1 // pred_fallthru
      _
    %v113 = vld [vmem:[#allocation2] sm:$0xff]
    %v114 = vld [vmem:[#allocation2 + $0x8] sm:$0xff]
    %v115 = vpack.c.bf16 %v114, %v113
    %v116 = vld [vmem:[#allocation10] sm:$0xff]
    %v117 = vld [vmem:[#allocation10 + $0x8] sm:$0xff]
    %v118 = vld [vmem:[#allocation10 + $0x10] sm:$0xf]
    %v119 = vld [vmem:[#allocation10 + $0x14] sm:$0xff]
    %v120 = vld [vmem:[#allocation10 + $0x1c] sm:$0xff]
    %v121 = vld [vmem:[#allocation10 + $0x24] sm:$0xf]
    %v122 = vld [vmem:[#allocation10 + $0x28] sm:$0xff]
    %v123 = vld [vmem:[#allocation10 + $0x30] sm:$0xff]
    %v124 = vld [vmem:[#allocation10 + $0x38] sm:$0xf]
    %v125 = vld [vmem:[#allocation10 + $0x3c] sm:$0xff]
    %v126 = vld [vmem:[#allocation10 + $0x44] sm:$0xff]
    %v127 = vld [vmem:[#allocation10 + $0x4c] sm:$0xf]
    %v128 = vld [vmem:[#allocation10 + $0x50] sm:$0xff]
    %v129 = vld [vmem:[#allocation10 + $0x58] sm:$0xff]
    %v130 = vld [vmem:[#allocation10 + $0x60] sm:$0xf]
    %v131 = vld [vmem:[#allocation10 + $0x64] sm:$0xff]
    %v132 = vld [vmem:[#allocation10 + $0x6c] sm:$0xff]
    %v133 = vld [vmem:[#allocation10 + $0x74] sm:$0xf]
    %v134 = vld [vmem:[#allocation10 + $0x78] sm:$0xff]
    %v135 = vld [vmem:[#allocation10 + $0x80] sm:$0xff]
    %v136 = vld [vmem:[#allocation10 + $0x88] sm:$0xf]
    %v137 = vld [vmem:[#allocation10 + $0x8c] sm:$0xff]
    %v138 = vld [vmem:[#allocation10 + $0x94] sm:$0xff]
    %v139 = vld [vmem:[#allocation10 + $0x9c] sm:$0xf]
    %v140 = vld [vmem:[#allocation10 + $0xa0] sm:$0xff]
    %v141 = vld [vmem:[#allocation10 + $0xa8] sm:$0xff]
    %v142 = vld [vmem:[#allocation10 + $0xb0] sm:$0xf]
    %v143 = vld [vmem:[#allocation10 + $0xb4] sm:$0xff]
    %v144 = vld [vmem:[#allocation10 + $0xbc] sm:$0xff]
    %v145 = vld [vmem:[#allocation10 + $0xc4] sm:$0xf]
    %v146 = vld [vmem:[#allocation10 + $0xc8] sm:$0xff]
    %v147 = vld [vmem:[#allocation10 + $0xd0] sm:$0xff]
    %v148 = vld [vmem:[#allocation10 + $0xd8] sm:$0xf]
    %v149 = vld [vmem:[#allocation10 + $0xdc] sm:$0xff]
    %v150 = vld [vmem:[#allocation10 + $0xe4] sm:$0xff]
    %v151 = vld [vmem:[#allocation10 + $0xec] sm:$0xf]
    %v152 = vld [vmem:[#allocation10 + $0xf0] sm:$0xff]
    %v153 = vld [vmem:[#allocation10 + $0xf8] sm:$0xff]
    %v154 = vld [vmem:[#allocation10 + $0x100] sm:$0xf]
    %v155 = vld [vmem:[#allocation10 + $0x104] sm:$0xff]
    %v156 = vld [vmem:[#allocation10 + $0x10c] sm:$0xff]
    %v157 = vld [vmem:[#allocation10 + $0x114] sm:$0xf]
    %v158 = vld [vmem:[#allocation10 + $0x118] sm:$0xff]
    %v159 = vld [vmem:[#allocation10 + $0x120] sm:$0xff]
    %v160 = vld [vmem:[#allocation10 + $0x128] sm:$0xf]
    %v161 = vld [vmem:[#allocation10 + $0x12c] sm:$0xff]
    %v162 = vld [vmem:[#allocation10 + $0x134] sm:$0xff]
    %v163 = vld [vmem:[#allocation10 + $0x13c] sm:$0xf]
    %v164 = vld [vmem:[#allocation7] sm:$0xff]
    %v165 = vld [vmem:[#allocation7 + $0x8] sm:$0xff]
    %v166 = vpack.c.bf16 %v165, %v164
    %v167 = vld [vmem:[#allocation11] sm:$0xff]
    %v168 = vld [vmem:[#allocation11 + $0x8] sm:$0xff]
    %v169 = vld [vmem:[#allocation11 + $0x10] sm:$0xf]
    %v170 = vld [vmem:[#allocation11 + $0x14] sm:$0xff]
    %v171 = vld [vmem:[#allocation11 + $0x1c] sm:$0xff]
    %v172 = vld [vmem:[#allocation11 + $0x24] sm:$0xf]
    %v173 = vld [vmem:[#allocation11 + $0x28] sm:$0xff]
    %v174 = vld [vmem:[#allocation11 + $0x30] sm:$0xff]
    %v175 = vld [vmem:[#allocation11 + $0x38] sm:$0xf]
    %v176 = vld [vmem:[#allocation11 + $0x3c] sm:$0xff]
    %v177 = vld [vmem:[#allocation11 + $0x44] sm:$0xff]
    %v178 = vld [vmem:[#allocation11 + $0x4c] sm:$0xf]
    %v179 = vld [vmem:[#allocation11 + $0x50] sm:$0xff]
    %v180 = vld [vmem:[#allocation11 + $0x58] sm:$0xff]
    %v181 = vld [vmem:[#allocation11 + $0x60] sm:$0xf]
    %v182 = vld [vmem:[#allocation11 + $0x64] sm:$0xff]
    %v183 = vld [vmem:[#allocation11 + $0x6c] sm:$0xff]
    %v184 = vld [vmem:[#allocation11 + $0x74] sm:$0xf]
    %v185 = vld [vmem:[#allocation11 + $0x78] sm:$0xff]
    %v186 = vld [vmem:[#allocation11 + $0x80] sm:$0xff]
    %v187 = vld [vmem:[#allocation11 + $0x88] sm:$0xf]
    %v188 = vld [vmem:[#allocation11 + $0x8c] sm:$0xff]
    %v189 = vld [vmem:[#allocation11 + $0x94] sm:$0xff]
    %v190 = vld [vmem:[#allocation11 + $0x9c] sm:$0xf]
    %v191 = vld [vmem:[#allocation11 + $0xa0] sm:$0xff]
    %v192 = vld [vmem:[#allocation11 + $0xa8] sm:$0xff]
    %v193 = vld [vmem:[#allocation11 + $0xb0] sm:$0xf]
    %v194 = vld [vmem:[#allocation11 + $0xb4] sm:$0xff]
    %v195 = vld [vmem:[#allocation11 + $0xbc] sm:$0xff]
    %v196 = vld [vmem:[#allocation11 + $0xc4] sm:$0xf]
    %v197 = vld [vmem:[#allocation11 + $0xc8] sm:$0xff]
    %v198 = vld [vmem:[#allocation11 + $0xd0] sm:$0xff]
    %v199 = vld [vmem:[#allocation11 + $0xd8] sm:$0xf]
    %v200 = vld [vmem:[#allocation11 + $0xdc] sm:$0xff]
    %v201 = vld [vmem:[#allocation11 + $0xe4] sm:$0xff]
    %v202 = vld [vmem:[#allocation11 + $0xec] sm:$0xf]
    %v203 = vld [vmem:[#allocation11 + $0xf0] sm:$0xff]
    %v204 = vld [vmem:[#allocation11 + $0xf8] sm:$0xff]
    %v205 = vld [vmem:[#allocation11 + $0x100] sm:$0xf]
    %v206 = vld [vmem:[#allocation11 + $0x104] sm:$0xff]
    %v207 = vld [vmem:[#allocation11 + $0x10c] sm:$0xff]
    %v208 = vld [vmem:[#allocation11 + $0x114] sm:$0xf]
    %v209 = vld [vmem:[#allocation11 + $0x118] sm:$0xff]
    %v210 = vld [vmem:[#allocation11 + $0x120] sm:$0xff]
    %v211 = vld [vmem:[#allocation11 + $0x128] sm:$0xf]
    %v212 = vld [vmem:[#allocation11 + $0x12c] sm:$0xff]
    %v213 = vld [vmem:[#allocation11 + $0x134] sm:$0xff]
    %v214 = vld [vmem:[#allocation11 + $0x13c] sm:$0xf]
    %v263 = vunpack.c.l.b16 %v167
    %v264 = vunpack.c.h.b16 %v167
    %v265 = vunpack.c.l.b16 %v168
    %v266 = vunpack.c.h.b16 %v168
    %v267 = vunpack.c.l.b16 %v169
    %v268 = vunpack.c.l.b16 %v170
    %v269 = vunpack.c.h.b16 %v170
    %v270 = vunpack.c.l.b16 %v171
    %v271 = vunpack.c.h.b16 %v171
    %v272 = vunpack.c.l.b16 %v172
    %v273 = vunpack.c.l.b16 %v173
    %v274 = vunpack.c.h.b16 %v173
    %v275 = vunpack.c.l.b16 %v174
    %v276 = vunpack.c.h.b16 %v174
    %v277 = vunpack.c.l.b16 %v175
    %v278 = vunpack.c.l.b16 %v176
    %v279 = vunpack.c.h.b16 %v176
    %v280 = vunpack.c.l.b16 %v177
    %v281 = vunpack.c.h.b16 %v177
    %v282 = vunpack.c.l.b16 %v178
    %v283 = vunpack.c.l.b16 %v179
    %v284 = vunpack.c.h.b16 %v179
    %v285 = vunpack.c.l.b16 %v180
    %v286 = vunpack.c.h.b16 %v180
    %v287 = vunpack.c.l.b16 %v181
    %v288 = vunpack.c.l.b16 %v182
    %v289 = vunpack.c.h.b16 %v182
    %v290 = vunpack.c.l.b16 %v183
    %v291 = vunpack.c.h.b16 %v183
    %v292 = vunpack.c.l.b16 %v184
    %v293 = vunpack.c.l.b16 %v185
    %v294 = vunpack.c.h.b16 %v185
    %v295 = vunpack.c.l.b16 %v186
    %v296 = vunpack.c.h.b16 %v186
    %v297 = vunpack.c.l.b16 %v187
    %v298 = vunpack.c.l.b16 %v188
    %v299 = vunpack.c.h.b16 %v188
    %v300 = vunpack.c.l.b16 %v189
    %v301 = vunpack.c.h.b16 %v189
    %v302 = vunpack.c.l.b16 %v190
    %v303 = vunpack.c.l.b16 %v191
    %v304 = vunpack.c.h.b16 %v191
    %v305 = vunpack.c.l.b16 %v192
    %v306 = vunpack.c.h.b16 %v192
    %v307 = vunpack.c.l.b16 %v193
    %v308 = vunpack.c.l.b16 %v194
    %v309 = vunpack.c.h.b16 %v194
    %v310 = vunpack.c.l.b16 %v195
    %v311 = vunpack.c.h.b16 %v195
    %v312 = vunpack.c.l.b16 %v196
    %v313 = vunpack.c.l.b16 %v197
    %v314 = vunpack.c.h.b16 %v197
    %v315 = vunpack.c.l.b16 %v198
    %v316 = vunpack.c.h.b16 %v198
    %v317 = vunpack.c.l.b16 %v199
    %v318 = vunpack.c.l.b16 %v200
    %v319 = vunpack.c.h.b16 %v200
    %v320 = vunpack.c.l.b16 %v201
    %v321 = vunpack.c.h.b16 %v201
    %v322 = vunpack.c.l.b16 %v202
    %v323 = vunpack.c.l.b16 %v203
    %v324 = vunpack.c.h.b16 %v203
    %v325 = vunpack.c.l.b16 %v204
    %v326 = vunpack.c.h.b16 %v204
    %v327 = vunpack.c.l.b16 %v205
    %v328 = vunpack.c.l.b16 %v206
    %v329 = vunpack.c.h.b16 %v206
    %v330 = vunpack.c.l.b16 %v207
    %v331 = vunpack.c.h.b16 %v207
    %v332 = vunpack.c.l.b16 %v208
    %v333 = vunpack.c.l.b16 %v209
    %v334 = vunpack.c.h.b16 %v209
    %v335 = vunpack.c.l.b16 %v210
    %v336 = vunpack.c.h.b16 %v210
    %v337 = vunpack.c.l.b16 %v211
    %v338 = vunpack.c.l.b16 %v212
    %v339 = vunpack.c.h.b16 %v212
    %v340 = vunpack.c.l.b16 %v213
    %v341 = vunpack.c.h.b16 %v213
    %v342 = vunpack.c.l.b16 %v214
    %v343 = vpack.c.b16 %v268, %v263
    %v344 = vpack.c.b16 %v269, %v264
    %v345 = vpack.c.b16 %v270, %v265
    %v346 = vpack.c.b16 %v271, %v266
    %v347 = vpack.c.b16 %v272, %v267
    %v348 = vpack.c.b16 %v278, %v273
    %v349 = vpack.c.b16 %v279, %v274
    %v350 = vpack.c.b16 %v280, %v275
    %v351 = vpack.c.b16 %v281, %v276
    %v352 = vpack.c.b16 %v282, %v277
    %v353 = vpack.c.b16 %v288, %v283
    %v354 = vpack.c.b16 %v289, %v284
    %v355 = vpack.c.b16 %v290, %v285
    %v356 = vpack.c.b16 %v291, %v286
    %v357 = vpack.c.b16 %v292, %v287
    %v358 = vpack.c.b16 %v298, %v293
    %v359 = vpack.c.b16 %v299, %v294
    %v360 = vpack.c.b16 %v300, %v295
    %v361 = vpack.c.b16 %v301, %v296
    %v362 = vpack.c.b16 %v302, %v297
    %v363 = vpack.c.b16 %v308, %v303
    %v364 = vpack.c.b16 %v309, %v304
    %v365 = vpack.c.b16 %v310, %v305
    %v366 = vpack.c.b16 %v311, %v306
    %v367 = vpack.c.b16 %v312, %v307
    %v368 = vpack.c.b16 %v318, %v313
    %v369 = vpack.c.b16 %v319, %v314
    %v370 = vpack.c.b16 %v320, %v315
    %v371 = vpack.c.b16 %v321, %v316
    %v372 = vpack.c.b16 %v322, %v317
    %v373 = vpack.c.b16 %v328, %v323
    %v374 = vpack.c.b16 %v329, %v324
    %v375 = vpack.c.b16 %v330, %v325
    %v376 = vpack.c.b16 %v331, %v326
    %v377 = vpack.c.b16 %v332, %v327
    %v378 = vpack.c.b16 %v338, %v333
    %v379 = vpack.c.b16 %v339, %v334
    %v380 = vpack.c.b16 %v340, %v335
    %v381 = vpack.c.b16 %v341, %v336
    %v382 = vpack.c.b16 %v342, %v337
    %423 = vmatprep.subr.bf16.mxu0 %v379
    %424 = vmatpush1.bf16.msra.mxu0 %v378
    %425 = vmatprep.subr.bf16.mxu0 %v374
    %426 = vmatpush1.bf16.msra.mxu0 %v373
    %427 = vmatprep.subr.bf16.mxu0 %v369
    %428 = vmatpush1.bf16.msra.mxu0 %v368
    %429 = vmatprep.subr.bf16.mxu0 %v364
    %430 = vmatpush1.bf16.msra.mxu0 %v363
    %431 = vmatprep.subr.bf16.mxu0 %v359
    %432 = vmatpush1.bf16.msra.mxu0 %v358
    %433 = vmatprep.subr.bf16.mxu0 %v354
    %434 = vmatpush1.bf16.msra.mxu0 %v353
    %435 = vmatprep.subr.bf16.mxu0 %v349
    %436 = vmatpush1.bf16.msra.mxu0 %v348
    %437 = vmatprep.subr.bf16.mxu0 %v344
    %438 = vmatpush1.bf16.msra.mxu0 %v343
    %439 = vmatprep.subr.bf16.mxu0 0
    %440 = vmatpush2.bf16.msra.mxu0 0
    %441 = vmatprep.subr.bf16.mxu0 0
    %442 = vmatpush2.bf16.msra.mxu0 0
    %443 = vmatprep.subr.bf16.mxu0 0
    %444 = vmatpush2.bf16.msra.mxu0 0
    %445 = vmatprep.subr.bf16.mxu0 0
    %446 = vmatpush2.bf16.msra.mxu0 0
    %447 = vmatprep.subr.bf16.mxu0 0
    %448 = vmatpush2.bf16.msra.mxu0 0
    %449 = vmatprep.subr.bf16.mxu0 0
    %450 = vmatpush2.bf16.msra.mxu0 0
    %451 = vmatprep.subr.bf16.mxu0 0
    %452 = vmatpush2.bf16.msra.mxu0 0
    %453 = vmatprep.subr.bf16.mxu0 0
    %454 = vmatpush2.bf16.msra.mxu0 0
    %455 = vmatprep.mubr.bf16.mxu0 0
    %456 = vmatmul.mubr.bf16.gmra.mxu0 %v166
    %v457 = vpop.f32.mrf.mxu0
    %v458 = vadd.f32 0.0, %v457
    %v459 = vpop.f32.mrf.mxu0
    %v460 = vadd.f32 0.0, %v459
    %v461 = vpop.f32.mrf.mxu0
    %v462 = vadd.f32 0.0, %v461
    %v463 = vpop.f32.mrf.mxu0
    %v464 = vadd.f32 0.0, %v463
    %465 = vdwg.mxu0
    %466 = vmatprep.subr.bf16.mxu0 %v381
    %467 = vmatpush1.bf16.msra.mxu0 %v380
    %468 = vmatprep.subr.bf16.mxu0 %v376
    %469 = vmatpush1.bf16.msra.mxu0 %v375
    %470 = vmatprep.subr.bf16.mxu0 %v371
    %471 = vmatpush1.bf16.msra.mxu0 %v370
    %472 = vmatprep.subr.bf16.mxu0 %v366
    %473 = vmatpush1.bf16.msra.mxu0 %v365
    %474 = vmatprep.subr.bf16.mxu0 %v361
    %475 = vmatpush1.bf16.msra.mxu0 %v360
    %476 = vmatprep.subr.bf16.mxu0 %v356
    %477 = vmatpush1.bf16.msra.mxu0 %v355
    %478 = vmatprep.subr.bf16.mxu0 %v351
    %479 = vmatpush1.bf16.msra.mxu0 %v350
    %480 = vmatprep.subr.bf16.mxu0 %v346
    %481 = vmatpush1.bf16.msra.mxu0 %v345
    %482 = vmatprep.subr.bf16.mxu0 0
    %483 = vmatpush2.bf16.msra.mxu0 0
    %484 = vmatprep.subr.bf16.mxu0 0
    %485 = vmatpush2.bf16.msra.mxu0 0
    %486 = vmatprep.subr.bf16.mxu0 0
    %487 = vmatpush2.bf16.msra.mxu0 0
    %488 = vmatprep.subr.bf16.mxu0 0
    %489 = vmatpush2.bf16.msra.mxu0 0
    %490 = vmatprep.subr.bf16.mxu0 0
    %491 = vmatpush2.bf16.msra.mxu0 0
    %492 = vmatprep.subr.bf16.mxu0 0
    %493 = vmatpush2.bf16.msra.mxu0 0
    %494 = vmatprep.subr.bf16.mxu0 0
    %495 = vmatpush2.bf16.msra.mxu0 0
    %496 = vmatprep.subr.bf16.mxu0 0
    %497 = vmatpush2.bf16.msra.mxu0 0
    %498 = vmatprep.mubr.bf16.mxu0 0
    %499 = vmatmul.mubr.bf16.gmra.mxu0 %v166
    %v500 = vpop.f32.mrf.mxu0
    %v501 = vadd.f32 0.0, %v500
    %v502 = vpop.f32.mrf.mxu0
    %v503 = vadd.f32 0.0, %v502
    %v504 = vpop.f32.mrf.mxu0
    %v505 = vadd.f32 0.0, %v504
    %v506 = vpop.f32.mrf.mxu0
    %v507 = vadd.f32 0.0, %v506
    %508 = vdwg.mxu0
    %509 = vmatprep.subr.bf16.mxu0 0
    %510 = vmatpush1.bf16.msra.mxu0 %v382
    %511 = vmatprep.subr.bf16.mxu0 0
    %512 = vmatpush1.bf16.msra.mxu0 %v377
    %513 = vmatprep.subr.bf16.mxu0 0
    %514 = vmatpush1.bf16.msra.mxu0 %v372
    %515 = vmatprep.subr.bf16.mxu0 0
    %516 = vmatpush1.bf16.msra.mxu0 %v367
    %517 = vmatprep.subr.bf16.mxu0 0
    %518 = vmatpush1.bf16.msra.mxu0 %v362
    %519 = vmatprep.subr.bf16.mxu0 0
    %520 = vmatpush1.bf16.msra.mxu0 %v357
    %521 = vmatprep.subr.bf16.mxu0 0
    %522 = vmatpush1.bf16.msra.mxu0 %v352
    %523 = vmatprep.subr.bf16.mxu0 0
    %524 = vmatpush1.bf16.msra.mxu0 %v347
    %525 = vmatprep.subr.bf16.mxu0 0
    %526 = vmatpush2.bf16.msra.mxu0 0
    %527 = vmatprep.subr.bf16.mxu0 0
    %528 = vmatpush2.bf16.msra.mxu0 0
    %529 = vmatprep.subr.bf16.mxu0 0
    %530 = vmatpush2.bf16.msra.mxu0 0
    %531 = vmatprep.subr.bf16.mxu0 0
    %532 = vmatpush2.bf16.msra.mxu0 0
    %533 = vmatprep.subr.bf16.mxu0 0
    %534 = vmatpush2.bf16.msra.mxu0 0
    %535 = vmatprep.subr.bf16.mxu0 0
    %536 = vmatpush2.bf16.msra.mxu0 0
    %537 = vmatprep.subr.bf16.mxu0 0
    %538 = vmatpush2.bf16.msra.mxu0 0
    %539 = vmatprep.subr.bf16.mxu0 0
    %540 = vmatpush2.bf16.msra.mxu0 0
    %541 = vmatprep.mubr.bf16.mxu0 0
    %542 = vmatmul.mubr.bf16.gmra.mxu0 %v166
    %v543 = vpop.f32.mrf.mxu0
    %v544 = vadd.f32 0.0, %v543
    %v545 = vpop.f32.mrf.mxu0
    %v546 = vpop.f32.mrf.mxu0
    %v547 = vadd.f32 0.0, %v546
    %v548 = vpop.f32.mrf.mxu0
    %549 = vdwg.mxu0
    %v598 = vunpack.c.l.b16 %v116
    %v599 = vunpack.c.h.b16 %v116
    %v600 = vunpack.c.l.b16 %v117
    %v601 = vunpack.c.h.b16 %v117
    %v602 = vunpack.c.l.b16 %v118
    %v603 = vunpack.c.l.b16 %v119
    %v604 = vunpack.c.h.b16 %v119
    %v605 = vunpack.c.l.b16 %v120
    %v606 = vunpack.c.h.b16 %v120
    %v607 = vunpack.c.l.b16 %v121
    %v608 = vunpack.c.l.b16 %v122
    %v609 = vunpack.c.h.b16 %v122
    %v610 = vunpack.c.l.b16 %v123
    %v611 = vunpack.c.h.b16 %v123
    %v612 = vunpack.c.l.b16 %v124
    %v613 = vunpack.c.l.b16 %v125
    %v614 = vunpack.c.h.b16 %v125
    %v615 = vunpack.c.l.b16 %v126
    %v616 = vunpack.c.h.b16 %v126
    %v617 = vunpack.c.l.b16 %v127
    %v618 = vunpack.c.l.b16 %v128
    %v619 = vunpack.c.h.b16 %v128
    %v620 = vunpack.c.l.b16 %v129
    %v621 = vunpack.c.h.b16 %v129
    %v622 = vunpack.c.l.b16 %v130
    %v623 = vunpack.c.l.b16 %v131
    %v624 = vunpack.c.h.b16 %v131
    %v625 = vunpack.c.l.b16 %v132
    %v626 = vunpack.c.h.b16 %v132
    %v627 = vunpack.c.l.b16 %v133
    %v628 = vunpack.c.l.b16 %v134
    %v629 = vunpack.c.h.b16 %v134
    %v630 = vunpack.c.l.b16 %v135
    %v631 = vunpack.c.h.b16 %v135
    %v632 = vunpack.c.l.b16 %v136
    %v633 = vunpack.c.l.b16 %v137
    %v634 = vunpack.c.h.b16 %v137
    %v635 = vunpack.c.l.b16 %v138
    %v636 = vunpack.c.h.b16 %v138
    %v637 = vunpack.c.l.b16 %v139
    %v638 = vunpack.c.l.b16 %v140
    %v639 = vunpack.c.h.b16 %v140
    %v640 = vunpack.c.l.b16 %v141
    %v641 = vunpack.c.h.b16 %v141
    %v642 = vunpack.c.l.b16 %v142
    %v643 = vunpack.c.l.b16 %v143
    %v644 = vunpack.c.h.b16 %v143
    %v645 = vunpack.c.l.b16 %v144
    %v646 = vunpack.c.h.b16 %v144
    %v647 = vunpack.c.l.b16 %v145
    %v648 = vunpack.c.l.b16 %v146
    %v649 = vunpack.c.h.b16 %v146
    %v650 = vunpack.c.l.b16 %v147
    %v651 = vunpack.c.h.b16 %v147
    %v652 = vunpack.c.l.b16 %v148
    %v653 = vunpack.c.l.b16 %v149
    %v654 = vunpack.c.h.b16 %v149
    %v655 = vunpack.c.l.b16 %v150
    %v656 = vunpack.c.h.b16 %v150
    %v657 = vunpack.c.l.b16 %v151
    %v658 = vunpack.c.l.b16 %v152
    %v659 = vunpack.c.h.b16 %v152
    %v660 = vunpack.c.l.b16 %v153
    %v661 = vunpack.c.h.b16 %v153
    %v662 = vunpack.c.l.b16 %v154
    %v663 = vunpack.c.l.b16 %v155
    %v664 = vunpack.c.h.b16 %v155
    %v665 = vunpack.c.l.b16 %v156
    %v666 = vunpack.c.h.b16 %v156
    %v667 = vunpack.c.l.b16 %v157
    %v668 = vunpack.c.l.b16 %v158
    %v669 = vunpack.c.h.b16 %v158
    %v670 = vunpack.c.l.b16 %v159
    %v671 = vunpack.c.h.b16 %v159
    %v672 = vunpack.c.l.b16 %v160
    %v673 = vunpack.c.l.b16 %v161
    %v674 = vunpack.c.h.b16 %v161
    %v675 = vunpack.c.l.b16 %v162
    %v676 = vunpack.c.h.b16 %v162
    %v677 = vunpack.c.l.b16 %v163
    %v678 = vpack.c.b16 %v603, %v598
    %v679 = vpack.c.b16 %v604, %v599
    %v680 = vpack.c.b16 %v605, %v600
    %v681 = vpack.c.b16 %v606, %v601
    %v682 = vpack.c.b16 %v607, %v602
    %v683 = vpack.c.b16 %v613, %v608
    %v684 = vpack.c.b16 %v614, %v609
    %v685 = vpack.c.b16 %v615, %v610
    %v686 = vpack.c.b16 %v616, %v611
    %v687 = vpack.c.b16 %v617, %v612
    %v688 = vpack.c.b16 %v623, %v618
    %v689 = vpack.c.b16 %v624, %v619
    %v690 = vpack.c.b16 %v625, %v620
    %v691 = vpack.c.b16 %v626, %v621
    %v692 = vpack.c.b16 %v627, %v622
    %v693 = vpack.c.b16 %v633, %v628
    %v694 = vpack.c.b16 %v634, %v629
    %v695 = vpack.c.b16 %v635, %v630
    %v696 = vpack.c.b16 %v636, %v631
    %v697 = vpack.c.b16 %v637, %v632
    %v698 = vpack.c.b16 %v643, %v638
    %v699 = vpack.c.b16 %v644, %v639
    %v700 = vpack.c.b16 %v645, %v640
    %v701 = vpack.c.b16 %v646, %v641
    %v702 = vpack.c.b16 %v647, %v642
    %v703 = vpack.c.b16 %v653, %v648
    %v704 = vpack.c.b16 %v654, %v649
    %v705 = vpack.c.b16 %v655, %v650
    %v706 = vpack.c.b16 %v656, %v651
    %v707 = vpack.c.b16 %v657, %v652
    %v708 = vpack.c.b16 %v663, %v658
    %v709 = vpack.c.b16 %v664, %v659
    %v710 = vpack.c.b16 %v665, %v660
    %v711 = vpack.c.b16 %v666, %v661
    %v712 = vpack.c.b16 %v667, %v662
    %v713 = vpack.c.b16 %v673, %v668
    %v714 = vpack.c.b16 %v674, %v669
    %v715 = vpack.c.b16 %v675, %v670
    %v716 = vpack.c.b16 %v676, %v671
    %v717 = vpack.c.b16 %v677, %v672
    %758 = vmatprep.subr.bf16.mxu0 %v714
    %759 = vmatpush1.bf16.msra.mxu0 %v713
    %760 = vmatprep.subr.bf16.mxu0 %v709
    %761 = vmatpush1.bf16.msra.mxu0 %v708
    %762 = vmatprep.subr.bf16.mxu0 %v704
    %763 = vmatpush1.bf16.msra.mxu0 %v703
    %764 = vmatprep.subr.bf16.mxu0 %v699
    %765 = vmatpush1.bf16.msra.mxu0 %v698
    %766 = vmatprep.subr.bf16.mxu0 %v694
    %767 = vmatpush1.bf16.msra.mxu0 %v693
    %768 = vmatprep.subr.bf16.mxu0 %v689
    %769 = vmatpush1.bf16.msra.mxu0 %v688
    %770 = vmatprep.subr.bf16.mxu0 %v684
    %771 = vmatpush1.bf16.msra.mxu0 %v683
    %772 = vmatprep.subr.bf16.mxu0 %v679
    %773 = vmatpush1.bf16.msra.mxu0 %v678
    %774 = vmatprep.subr.bf16.mxu0 0
    %775 = vmatpush2.bf16.msra.mxu0 0
    %776 = vmatprep.subr.bf16.mxu0 0
    %777 = vmatpush2.bf16.msra.mxu0 0
    %778 = vmatprep.subr.bf16.mxu0 0
    %779 = vmatpush2.bf16.msra.mxu0 0
    %780 = vmatprep.subr.bf16.mxu0 0
    %781 = vmatpush2.bf16.msra.mxu0 0
    %782 = vmatprep.subr.bf16.mxu0 0
    %783 = vmatpush2.bf16.msra.mxu0 0
    %784 = vmatprep.subr.bf16.mxu0 0
    %785 = vmatpush2.bf16.msra.mxu0 0
    %786 = vmatprep.subr.bf16.mxu0 0
    %787 = vmatpush2.bf16.msra.mxu0 0
    %788 = vmatprep.subr.bf16.mxu0 0
    %789 = vmatpush2.bf16.msra.mxu0 0
    %790 = vmatprep.mubr.bf16.mxu0 0
    %791 = vmatmul.mubr.bf16.gmra.mxu0 %v115
    %v792 = vpop.f32.mrf.mxu0
    %v793 = vadd.f32 %v458, %v792
    %v794 = vpop.f32.mrf.mxu0
    %v795 = vadd.f32 %v460, %v794
    %v796 = vpop.f32.mrf.mxu0
    %v797 = vadd.f32 %v462, %v796
    %v798 = vpop.f32.mrf.mxu0
    %v799 = vadd.f32 %v464, %v798
    %800 = vdwg.mxu0
    %801 = vmatprep.subr.bf16.mxu0 %v716
    %802 = vmatpush1.bf16.msra.mxu0 %v715
    %803 = vmatprep.subr.bf16.mxu0 %v711
    %804 = vmatpush1.bf16.msra.mxu0 %v710
    %805 = vmatprep.subr.bf16.mxu0 %v706
    %806 = vmatpush1.bf16.msra.mxu0 %v705
    %807 = vmatprep.subr.bf16.mxu0 %v701
    %808 = vmatpush1.bf16.msra.mxu0 %v700
    %809 = vmatprep.subr.bf16.mxu0 %v696
    %810 = vmatpush1.bf16.msra.mxu0 %v695
    %811 = vmatprep.subr.bf16.mxu0 %v691
    %812 = vmatpush1.bf16.msra.mxu0 %v690
    %813 = vmatprep.subr.bf16.mxu0 %v686
    %814 = vmatpush1.bf16.msra.mxu0 %v685
    %815 = vmatprep.subr.bf16.mxu0 %v681
    %816 = vmatpush1.bf16.msra.mxu0 %v680
    %817 = vmatprep.subr.bf16.mxu0 0
    %818 = vmatpush2.bf16.msra.mxu0 0
    %819 = vmatprep.subr.bf16.mxu0 0
    %820 = vmatpush2.bf16.msra.mxu0 0
    %821 = vmatprep.subr.bf16.mxu0 0
    %822 = vmatpush2.bf16.msra.mxu0 0
    %823 = vmatprep.subr.bf16.mxu0 0
    %824 = vmatpush2.bf16.msra.mxu0 0
    %825 = vmatprep.subr.bf16.mxu0 0
    %826 = vmatpush2.bf16.msra.mxu0 0
    %827 = vmatprep.subr.bf16.mxu0 0
    %828 = vmatpush2.bf16.msra.mxu0 0
    %829 = vmatprep.subr.bf16.mxu0 0
    %830 = vmatpush2.bf16.msra.mxu0 0
    %831 = vmatprep.subr.bf16.mxu0 0
    %832 = vmatpush2.bf16.msra.mxu0 0
    %833 = vmatprep.mubr.bf16.mxu0 0
    %834 = vmatmul.mubr.bf16.gmra.mxu0 %v115
    %v835 = vpop.f32.mrf.mxu0
    %v836 = vadd.f32 %v501, %v835
    %v837 = vpop.f32.mrf.mxu0
    %v838 = vadd.f32 %v503, %v837
    %v839 = vpop.f32.mrf.mxu0
    %v840 = vadd.f32 %v505, %v839
    %v841 = vpop.f32.mrf.mxu0
    %v842 = vadd.f32 %v507, %v841
    %843 = vdwg.mxu0
    %844 = vmatprep.subr.bf16.mxu0 0
    %845 = vmatpush1.bf16.msra.mxu0 %v717
    %846 = vmatprep.subr.bf16.mxu0 0
    %847 = vmatpush1.bf16.msra.mxu0 %v712
    %848 = vmatprep.subr.bf16.mxu0 0
    %849 = vmatpush1.bf16.msra.mxu0 %v707
    %850 = vmatprep.subr.bf16.mxu0 0
    %851 = vmatpush1.bf16.msra.mxu0 %v702
    %852 = vmatprep.subr.bf16.mxu0 0
    %853 = vmatpush1.bf16.msra.mxu0 %v697
    %854 = vmatprep.subr.bf16.mxu0 0
    %855 = vmatpush1.bf16.msra.mxu0 %v692
    %856 = vmatprep.subr.bf16.mxu0 0
    %857 = vmatpush1.bf16.msra.mxu0 %v687
    %858 = vmatprep.subr.bf16.mxu0 0
    %859 = vmatpush1.bf16.msra.mxu0 %v682
    %860 = vmatprep.subr.bf16.mxu0 0
    %861 = vmatpush2.bf16.msra.mxu0 0
    %862 = vmatprep.subr.bf16.mxu0 0
    %863 = vmatpush2.bf16.msra.mxu0 0
    %864 = vmatprep.subr.bf16.mxu0 0
    %865 = vmatpush2.bf16.msra.mxu0 0
    %866 = vmatprep.subr.bf16.mxu0 0
    %867 = vmatpush2.bf16.msra.mxu0 0
    %868 = vmatprep.subr.bf16.mxu0 0
    %869 = vmatpush2.bf16.msra.mxu0 0
    %870 = vmatprep.subr.bf16.mxu0 0
    %871 = vmatpush2.bf16.msra.mxu0 0
    %872 = vmatprep.subr.bf16.mxu0 0
    %873 = vmatpush2.bf16.msra.mxu0 0
    %874 = vmatprep.subr.bf16.mxu0 0
    %875 = vmatpush2.bf16.msra.mxu0 0
    %876 = vmatprep.mubr.bf16.mxu0 0
    %877 = vmatmul.mubr.bf16.gmra.mxu0 %v115
    %v878 = vpop.f32.mrf.mxu0
    %v879 = vadd.f32 %v544, %v878
    %v880 = vpop.f32.mrf.mxu0
    %v881 = vpop.f32.mrf.mxu0
    %v882 = vadd.f32 %v547, %v881
    %v883 = vpop.f32.mrf.mxu0
    %884 = vdwg.mxu0
    %v885 = vld [vmem:[%s6] sm:$0x1f]
    %v886 = vunpack.c.l.bf16 %v885
    %v887 = vunpack.c.h.bf16 %v885
    %v890 = vlaneseq
    %v891 = vshrl.u32 %v890, 7
    %v892 = vsub.s32 0, %v891
    %v893 = vrot.slane %v886, %v892
    %v894 = vlaneseq
    %v895 = vshrl.u32 %v894, 7
    %v896 = vsub.s32 2, %v895
    %v897 = vrot.slane %v886, %v896
    %v898 = vlaneseq
    %v899 = vshrl.u32 %v898, 7
    %v900 = vsub.s32 4, %v899
    %v901 = vrot.slane %v886, %v900
    %v902 = vlaneseq
    %v903 = vshrl.u32 %v902, 7
    %v904 = vsub.s32 6, %v903
    %v905 = vrot.slane %v886, %v904
    %v906 = vlaneseq
    %v907 = vshrl.u32 %v906, 7
    %v908 = vsub.s32 0, %v907
    %v909 = vrot.slane %v887, %v908
    %v915 = vlaneseq
    %v916 = vshrl.u32 %v915, 7
    %v917 = vsub.s32 0, %v916
    %v918 = vrot.slane %v893, %v917
    %v919 = vlaneseq
    %v920 = vshrl.u32 %v919, 7
    %v921 = vsub.s32 0, %v920
    %v922 = vrot.slane %v897, %v921
    %v923 = vlaneseq
    %v924 = vshrl.u32 %v923, 7
    %v925 = vsub.s32 0, %v924
    %v926 = vrot.slane %v901, %v925
    %v927 = vlaneseq
    %v928 = vshrl.u32 %v927, 7
    %v929 = vsub.s32 0, %v928
    %v930 = vrot.slane %v905, %v929
    %v931 = vlaneseq
    %v932 = vshrl.u32 %v931, 7
    %v933 = vsub.s32 0, %v932
    %v934 = vrot.slane %v909, %v933
    %v935 = vadd.f32 %v793, %v918
    %v936 = vadd.f32 %v795, %v922
    %v937 = vadd.f32 %v836, %v926
    %v938 = vadd.f32 %v838, %v930
    %v939 = vadd.f32 %v879, %v934
    %v940 = vadd.f32 %v797, %v918
    %v941 = vadd.f32 %v799, %v922
    %v942 = vadd.f32 %v840, %v926
    %v943 = vadd.f32 %v842, %v930
    %v944 = vadd.f32 %v882, %v934
    %v945 = vld [vmem:[#allocation5] sm:$0xff]
    %v946 = vld [vmem:[#allocation5 + $0x8] sm:$0xff]
    %v947 = vld [vmem:[#allocation8] sm:$0xff]
    %v948 = vld [vmem:[#allocation8 + $0x8] sm:$0xff]
    %v949 = vxor.u32 %v935, 2147483648
    %v950 = vxor.u32 %v940, 2147483648
    %v951 = vmul.f32 %v949, 1.442695
    %v952 = vpow.pop %v951
    %v953 = vmul.f32 %v950, 1.442695
    %v954 = vpow.pop %v953
    %v955 = vadd.f32 %v952, 1.0
    %v956 = vadd.f32 %v954, 1.0
    %v957 = vrcp.pop %v955
    %v958 = vmul.f32 1.0, %v957
    %v959 = vrcp.pop %v956
    %v960 = vmul.f32 1.0, %v959
    %v961 = vtanh.pop %v939
    %v962 = vtanh.pop %v944
    %v963 = vmul.f32 %v958, %v961
    %v964 = vmul.f32 %v960, %v962
    %v965 = vxor.u32 %v936, 2147483648
    %v966 = vxor.u32 %v941, 2147483648
    %v967 = vmul.f32 %v965, 1.442695
    %v968 = vpow.pop %v967
    %v969 = vmul.f32 %v966, 1.442695
    %v970 = vpow.pop %v969
    %v971 = vadd.f32 %v968, 1.0
    %v972 = vadd.f32 %v970, 1.0
    %v973 = vrcp.pop %v971
    %v974 = vmul.f32 1.0, %v973
    %v975 = vrcp.pop %v972
    %v976 = vmul.f32 1.0, %v975
    %v977 = vmul.f32 %v974, %v945
    %v978 = vmul.f32 %v976, %v946
    %v979 = vadd.f32 %v963, %v977
    %v980 = vadd.f32 %v964, %v978
    %v981 = vxor.u32 %v937, 2147483648
    %v982 = vxor.u32 %v942, 2147483648
    %v983 = vmul.f32 %v981, 1.442695
    %v984 = vpow.pop %v983
    %v985 = vmul.f32 %v982, 1.442695
    %v986 = vpow.pop %v985
    %v987 = vadd.f32 %v984, 1.0
    %v988 = vadd.f32 %v986, 1.0
    %v989 = vrcp.pop %v987
    %v990 = vmul.f32 1.0, %v989
    %v991 = vrcp.pop %v988
    %v992 = vmul.f32 1.0, %v991
    %v993 = vmul.f32 %v990, %v947
    %v994 = vmul.f32 %v992, %v948
    %v995 = vadd.f32 %v979, %v993
    %v996 = vadd.f32 %v980, %v994
    %v997 = vxor.u32 %v938, 2147483648
    %v998 = vxor.u32 %v943, 2147483648
    %v999 = vmul.f32 %v997, 1.442695
    %v1000 = vpow.pop %v999
    %v1001 = vmul.f32 %v998, 1.442695
    %v1002 = vpow.pop %v1001
    %v1003 = vadd.f32 %v1000, 1.0
    %v1004 = vadd.f32 %v1002, 1.0
    %v1005 = vrcp.pop %v1003
    %v1006 = vmul.f32 1.0, %v1005
    %v1007 = vrcp.pop %v1004
    %v1008 = vmul.f32 1.0, %v1007
    %v1009 = vtanh.pop %v995
    %v1010 = vtanh.pop %v996
    %v1011 = vmul.f32 %v1006, %v1009
    %v1012 = vmul.f32 %v1008, %v1010
    %v1013 = vpack.c.bf16 %v1012, %v1011
    %v1015 = vunpack.c.l.b16 %v1013
    %v1016 = vunpack.c.h.b16 %v1013
    %v1017 = vpack.c.b16 %v1015, %v1015
    %v1018 = vpack.c.b16 %v1016, %v1016
    %1021 = vst [vmem:[#allocation13] sm:$0xf] %v1017
    %1022 = vst [vmem:[#allocation13 + $0x4] sm:$0xf] %v1018
    %1023 = vst [vmem:[#allocation14] sm:$0xff] %v995
    %1024 = vst [vmem:[#allocation14 + $0x8] sm:$0xff] %v996
    // Predicated region
    $region54: #{tpu_custom_call.1} parent=1 // pred_check
      _
    $region55: #{tpu_custom_call.1} parent=1 // pred_check_branch
      %1026 = sbr.rel (0) target = $region57
    $region56: #{tpu_custom_call.1} parent=1 // pred_region
      %s1028 = ssub.s32 128, 128
      %1029 = vsyncadd [#allocation4], %s1028
      %s1030 = sshll.u32 [#allocation13], 4
      %s1031 = int_to_ptr.vmem [resolvable:$true] %s1030
      %1036 = dma.vmem_to_hbm [thread:$0]  %s1031, 128, %s7, [#allocation4], 64, 64, 4
    $region57: #{tpu_custom_call.1} parent=1 // pred_fallthru
      _
    // Predicated region
    $region58: #{tpu_custom_call.1} parent=1 // pred_check
      _
    $region59: #{tpu_custom_call.1} parent=1 // pred_check_branch
      %1038 = sbr.rel (0) target = $region61
    $region60: #{tpu_custom_call.1} parent=1 // pred_region
      %s1040 = ssub.s32 256, 256
      %1041 = vsyncadd [#allocation15], %s1040
      %s1042 = sshll.u32 [#allocation14], 4
      %s1043 = int_to_ptr.vmem [resolvable:$true] %s1042
      %1048 = dma.vmem_to_hbm [thread:$0]  %s1043, 256, %s8, [#allocation15], 128, 128, 8
    $region61: #{tpu_custom_call.1} parent=1 // pred_fallthru
      _
    // Predicated region
    $region62: #{tpu_custom_call.1} parent=1 // pred_check
      _
    $region63: #{tpu_custom_call.1} parent=1 // pred_check_branch
      %1050 = sbr.rel (0) target = $region65
    $region64: #{tpu_custom_call.1} parent=1 // pred_region
      %1051 = dma.done [#allocation4], 128
    $region65: #{tpu_custom_call.1} parent=1 // pred_fallthru
      _
    // Predicated region
    $region66: #{tpu_custom_call.1} parent=1 // pred_check
      _
    $region67: #{tpu_custom_call.1} parent=1 // pred_check_branch
      %1053 = sbr.rel (0) target = $region69
    $region68: #{tpu_custom_call.1} parent=1 // pred_region
      %1054 = dma.done [#allocation15], 256
    $region69: #{tpu_custom_call.1} parent=1 // pred_fallthru
      _
    %1055 = vsyncpa [#allocation3], 1
    %1056 = vsyncpa [#allocation6], 1
    %1057 = vsyncpa [#allocation9], 1
    %1058 = vsyncpa [#allocation12], 1
    %1059 = vsyncpa [#allocation4], 1
    %1060 = vsyncpa [#allocation15], 1

</llo_original>
